<compile_context>
chip_gen: v7x
topology: tpu7x:2x2x1
jax: 0.10.0
libtpu: 0.0.40
codegen_flags: <defaults>
</compile_context>

<pallas_src>
import math
import jax
import jax.numpy as jnp
from jax import lax
from jax.experimental import pallas as pl
from jax.experimental.pallas import tpu as pltpu

# ----------------------------- config ---------------------------------------
D_MODEL = 32
N_HEADS = 4
D_FF = 64
HEAD_DIM = D_MODEL // N_HEADS
LN_EPS = 1e-5

BATCH = 2
SEQ = 8

# slab row offsets (all multiples of 8 -> clean sublane slices)
_ROW_WQKV = 0                       # (D, 3D)
_ROW_WO = _ROW_WQKV + D_MODEL       # (D, D)
_ROW_W1 = _ROW_WO + D_MODEL         # (D, D_FF)
_ROW_W2 = _ROW_W1 + D_MODEL         # (D_FF, D)
_ROW_VEC = _ROW_W2 + D_FF           # (8, 3D) packed biases + LN params
_SLAB_ROWS = _ROW_VEC + 8           # 168


def _layernorm(h, gamma, beta):
    # Two independent reductions (mean and mean-of-squares) so the XLU reduces
    # are not serialized by a VPU subtract in between.
    mu = jnp.mean(h, axis=-1, keepdims=True)
    ms = jnp.mean(h * h, axis=-1, keepdims=True)
    var = ms - mu * mu
    return (h - mu) * lax.rsqrt(var + LN_EPS) * gamma + beta


# ----------------------------- kernel ----------------------------------------
def transformer_block_kernel(
    x_ref,       # (B*S, D)        all tokens, all batches
    slab_ref,    # (_SLAB_ROWS,3D) all weights / biases / LN params, one DMA
    o_ref,       # (B*S, D)
):
    x = x_ref[...]                                     # (N, D) f32
    N = x.shape[0]
    D, H, hd = D_MODEL, N_HEADS, HEAD_DIM

    # ---- unpack the single weight slab (static sublane/lane slices) --------
    wqkv = slab_ref[_ROW_WQKV:_ROW_WQKV + D, :]        # (D, 3D)  q-scale folded in
    wo = slab_ref[_ROW_WO:_ROW_WO + D, 0:D]            # (D, D)
    w1 = slab_ref[_ROW_W1:_ROW_W1 + D, 0:D_FF]         # (D, D_FF)
    w2 = slab_ref[_ROW_W2:_ROW_W2 + D_FF, 0:D]         # (D_FF, D)
    vec = slab_ref[_ROW_VEC:_ROW_VEC + 8, :]           # (8, 3D)

    b_qkv = vec[0:1, :]                                # (1, 3D)  bq pre-scaled
    b1 = vec[1:2, 0:D_FF]
    b_o = vec[2:3, 0:D]
    b2 = vec[3:4, 0:D]
    g1 = vec[4:5, 0:D]
    be1 = vec[5:6, 0:D]
    g2 = vec[6:7, 0:D]
    be2 = vec[7:8, 0:D]

    # ---- fused QKV projection: one MXU matmul (N, D) @ (D, 3D) -------------
    qkv = jnp.dot(x, wqkv, preferred_element_type=jnp.float32) + b_qkv
    q = qkv[:, 0:D]
    k = qkv[:, D:2 * D]
    v = qkv[:, 2 * D:3 * D]

    # ---- attention: statically unrolled (head, batch) blocks ----------------
    # Per-sequence (SEQ, SEQ) score blocks => no cross-batch attention by
    # construction, so no mask is needed.  All slices sit inside one lane tile
    # and at 8-row sublane boundaries -> no cross-lane relayouts.
    head_cols = []
    for h_idx in range(H):
        c0, c1 = h_idx * hd, (h_idx + 1) * hd
        seq_blocks = []
        for b_idx in range(BATCH):
            r0, r1 = b_idx * SEQ, (b_idx + 1) * SEQ
            qs = q[r0:r1, c0:c1]                       # (SEQ, hd)
            ks = k[r0:r1, c0:c1]                       # (SEQ, hd)
            vs = v[r0:r1, c0:c1]                       # (SEQ, hd)

            # scores[i, j] = q_i . k_j   (q already carries 1/sqrt(hd))
            s = lax.dot_general(
                qs, ks, (((1,), (1,)), ((), ())),
                preferred_element_type=jnp.float32)    # (SEQ, SEQ)
            s = s - jnp.max(s, axis=-1, keepdims=True)
            p = jnp.exp(s)
            p = p / jnp.sum(p, axis=-1, keepdims=True)  # exact divide

            seq_blocks.append(
                jnp.dot(p, vs, preferred_element_type=jnp.float32))  # (SEQ, hd)
        head_cols.append(jnp.concatenate(seq_blocks, axis=0))        # (N, hd)
    ctx = jnp.concatenate(head_cols, axis=1)                         # (N, D)

    # ---- output projection ---------------------------------------------------
    att = jnp.dot(ctx, wo, preferred_element_type=jnp.float32) + b_o

    # ---- residual + LayerNorm 1 (dropout == identity in eval) ---------------
    h1 = _layernorm(x + att, g1, be1)

    # ---- feed-forward: Linear -> ReLU -> Linear ------------------------------
    ff = jnp.maximum(jnp.dot(h1, w1, preferred_element_type=jnp.float32) + b1, 0.0)
    ff = jnp.dot(ff, w2, preferred_element_type=jnp.float32) + b2

    # ---- residual + LayerNorm 2 ----------------------------------------------
    o_ref[...] = _layernorm(h1 + ff, g2, be2).astype(o_ref.dtype)


# ----------------------------- wrapper ----------------------------------------
def transformer_block(x, params):
    """x: (B, S, D) float32.  params: dict of pre-transposed weights."""
    B, S, D = x.shape
    N = B * S
    W = 3 * D
    scale = 1.0 / math.sqrt(HEAD_DIM)

    # Fold the attention scale into wq / bq (free on the host).
    wqkv = jnp.concatenate(
        [params["wq"] * scale, params["wk"], params["wv"]], axis=1)       # (D, 3D)
    bqkv = jnp.concatenate(
        [params["bq"] * scale, params["bk"], params["bv"]], axis=1)       # (1, 3D)

    def _row(vrow):
        vrow = vrow.reshape(1, -1)
        return jnp.pad(vrow, ((0, 0), (0, W - vrow.shape[1])))

    vec = jnp.concatenate(
        [
            _row(bqkv),
            _row(params["b1"]),
            _row(params["bo"]),
            _row(params["b2"]),
            _row(params["g1"]),
            _row(params["be1"]),
            _row(params["g2"]),
            _row(params["be2"]),
        ],
        axis=0,
    )  # (8, 3D)

    def _pad_cols(m):
        return jnp.pad(m, ((0, 0), (0, W - m.shape[1])))

    # One sublane-concatenated slab: a single DMA for every static operand.
    slab = jnp.concatenate(
        [
            wqkv,                       # rows   0: 32
            _pad_cols(params["wo"]),    # rows  32: 64
            _pad_cols(params["w1"]),    # rows  64: 96
            _pad_cols(params["w2"]),    # rows  96:160
            vec,                        # rows 160:168
        ],
        axis=0,
    )  # (_SLAB_ROWS, 3D)

    x_flat = x.reshape(N, D)
    vmem = pl.BlockSpec(memory_space=pltpu.MemorySpace.VMEM)

    out_flat = pl.pallas_call(
        transformer_block_kernel,
        out_shape=jax.ShapeDtypeStruct((N, D), x.dtype),
        in_specs=[vmem, vmem],
        out_specs=vmem,
    )(x_flat, slab)

    # TODO(synk): dropout has no eval-mode effect; training-mode dropout would
    # need pltpu.prng_seed / prng_random_bits and is intentionally omitted.
    return out_flat.reshape(B, S, D)


# ----------------------------- pure-JAX reference ------------------------------
def reference_block(x, p):
    q = x @ p["wq"] + p["bq"]
    k = x @ p["wk"] + p["bk"]
    v = x @ p["wv"] + p["bv"]
    B, S, D = x.shape
    qh = q.reshape(B, S, N_HEADS, HEAD_DIM)
    kh = k.reshape(B, S, N_HEADS, HEAD_DIM)
    vh = v.reshape(B, S, N_HEADS, HEAD_DIM)
    scores = jnp.einsum("bqhd,bkhd->bhqk", qh, kh) / math.sqrt(HEAD_DIM)
    w = jax.nn.softmax(scores, axis=-1)
    ctx = jnp.einsum("bhqk,bkhd->bqhd", w, vh).reshape(B, S, D)
    att = ctx @ p["wo"] + p["bo"]
    h = x + att
    h = (h - h.mean(-1, keepdims=True)) * lax.rsqrt(
        h.var(-1, keepdims=True) + LN_EPS) * p["g1"] + p["be1"]
    ff = jnp.maximum(h @ p["w1"] + p["b1"], 0.0) @ p["w2"] + p["b2"]
    h2 = h + ff
    h2 = (h2 - h2.mean(-1, keepdims=True)) * lax.rsqrt(
        h2.var(-1, keepdims=True) + LN_EPS) * p["g2"] + p["be2"]
    return h2


# ----------------------------- main --------------------------------------------
if __name__ == "__main__":
    key = jax.random.PRNGKey(0)
    keys = jax.random.split(key, 12)

    def randn(k, shape, scale=0.02):
        return jax.random.normal(k, shape, dtype=jnp.float32) * scale

    params = {
        # attention (already transposed so the kernel computes x @ W)
        "wq": randn(keys[0], (D_MODEL, D_MODEL)),
        "wk": randn(keys[1], (D_MODEL, D_MODEL)),
        "wv": randn(keys[2], (D_MODEL, D_MODEL)),
        "bq": randn(keys[3], (1, D_MODEL)),
        "bk": randn(keys[4], (1, D_MODEL)),
        "bv": randn(keys[5], (1, D_MODEL)),
        "wo": randn(keys[6], (D_MODEL, D_MODEL)),
        "bo": randn(keys[7], (1, D_MODEL)),
        # feed-forward
        "w1": randn(keys[8], (D_MODEL, D_FF)),
        "b1": randn(keys[9], (1, D_FF)),
        "w2": randn(keys[10], (D_FF, D_MODEL)),
        "b2": jnp.zeros((1, D_MODEL), jnp.float32),
        # layer norms (PyTorch default init: weight=1, bias=0)
        "g1": jnp.ones((1, D_MODEL), jnp.float32),
        "be1": jnp.zeros((1, D_MODEL), jnp.float32),
        "g2": jnp.ones((1, D_MODEL), jnp.float32),
        "be2": jnp.zeros((1, D_MODEL), jnp.float32),
    }

    x = jax.random.normal(keys[11], (BATCH, SEQ, D_MODEL), dtype=jnp.float32)

    out = transformer_block(x, params)
    out = jax.block_until_ready(out)

    ref = reference_block(x, params)
    assert out.shape == (BATCH, SEQ, D_MODEL)
    assert jnp.allclose(out, ref, atol=1e-4, rtol=1e-4), "mismatch vs JAX reference"

    print("KERNEL_OK")
</pallas_src>

<mosaic_0001>
module attributes {stable_mosaic.version = 11 : i64} {
  func.func @transformer_block_kernel(%arg0: memref<16x32xf32, #tpu.memory_space<vmem>>, %arg1: memref<168x96xf32, #tpu.memory_space<vmem>>, %arg2: memref<16x32xf32, #tpu.memory_space<vmem>>) attributes {dimension_semantics = [], scalar_prefetch = 0 : i64, scratch_operands = 0 : i64, tpu.core_type = #tpu.core_type<tc>} {
    %c0 = arith.constant 0 : index
    %c0_0 = arith.constant 0 : index
    %0 = vector.load %arg0[%c0, %c0_0] : memref<16x32xf32, #tpu.memory_space<vmem>>, vector<16x32xf32>
    %c0_1 = arith.constant 0 : index
    %c0_2 = arith.constant 0 : index
    %1 = vector.load %arg1[%c0_1, %c0_2] : memref<168x96xf32, #tpu.memory_space<vmem>>, vector<32x96xf32>
    %c32 = arith.constant 32 : index
    %c0_3 = arith.constant 0 : index
    %2 = vector.load %arg1[%c32, %c0_3] : memref<168x96xf32, #tpu.memory_space<vmem>>, vector<32x32xf32>
    %c64 = arith.constant 64 : index
    %c0_4 = arith.constant 0 : index
    %3 = vector.load %arg1[%c64, %c0_4] : memref<168x96xf32, #tpu.memory_space<vmem>>, vector<32x64xf32>
    %c96 = arith.constant 96 : index
    %c0_5 = arith.constant 0 : index
    %4 = vector.load %arg1[%c96, %c0_5] : memref<168x96xf32, #tpu.memory_space<vmem>>, vector<64x32xf32>
    %c160 = arith.constant 160 : index
    %c0_6 = arith.constant 0 : index
    %5 = vector.load %arg1[%c160, %c0_6] : memref<168x96xf32, #tpu.memory_space<vmem>>, vector<8x96xf32>
    %6 = vector.extract_strided_slice %5 {offsets = [0, 0], sizes = [1, 96], strides = [1, 1]} : vector<8x96xf32> to vector<1x96xf32>
    %7 = vector.extract_strided_slice %5 {offsets = [1, 0], sizes = [1, 64], strides = [1, 1]} : vector<8x96xf32> to vector<1x64xf32>
    %8 = vector.extract_strided_slice %5 {offsets = [2, 0], sizes = [1, 32], strides = [1, 1]} : vector<8x96xf32> to vector<1x32xf32>
    %9 = vector.extract_strided_slice %5 {offsets = [3, 0], sizes = [1, 32], strides = [1, 1]} : vector<8x96xf32> to vector<1x32xf32>
    %10 = vector.extract_strided_slice %5 {offsets = [4, 0], sizes = [1, 32], strides = [1, 1]} : vector<8x96xf32> to vector<1x32xf32>
    %11 = vector.extract_strided_slice %5 {offsets = [5, 0], sizes = [1, 32], strides = [1, 1]} : vector<8x96xf32> to vector<1x32xf32>
    %12 = vector.extract_strided_slice %5 {offsets = [6, 0], sizes = [1, 32], strides = [1, 1]} : vector<8x96xf32> to vector<1x32xf32>
    %13 = vector.extract_strided_slice %5 {offsets = [7, 0], sizes = [1, 32], strides = [1, 1]} : vector<8x96xf32> to vector<1x32xf32>
    %cst = arith.constant dense<0.000000e+00> : vector<16x96xf32>
    %14 = tpu.matmul %0, %1, %cst {dimension_numbers = #tpu.dot_dimension_numbers<[1], [0], [0], [1], [0, 0, 1, 1], [], []>} : vector<16x32xf32>, vector<32x96xf32>, vector<16x96xf32> -> vector<16x96xf32>
    %15 = vector.broadcast %6 : vector<1x96xf32> to vector<16x96xf32>
    %16 = arith.addf %14, %15 : vector<16x96xf32>
    %17 = vector.extract_strided_slice %16 {offsets = [0, 0], sizes = [16, 32], strides = [1, 1]} : vector<16x96xf32> to vector<16x32xf32>
    %18 = vector.extract_strided_slice %16 {offsets = [0, 32], sizes = [16, 32], strides = [1, 1]} : vector<16x96xf32> to vector<16x32xf32>
    %19 = vector.extract_strided_slice %16 {offsets = [0, 64], sizes = [16, 32], strides = [1, 1]} : vector<16x96xf32> to vector<16x32xf32>
    %20 = vector.extract_strided_slice %17 {offsets = [0, 0], sizes = [8, 8], strides = [1, 1]} : vector<16x32xf32> to vector<8x8xf32>
    %21 = vector.extract_strided_slice %18 {offsets = [0, 0], sizes = [8, 8], strides = [1, 1]} : vector<16x32xf32> to vector<8x8xf32>
    %22 = vector.extract_strided_slice %19 {offsets = [0, 0], sizes = [8, 8], strides = [1, 1]} : vector<16x32xf32> to vector<8x8xf32>
    %cst_7 = arith.constant dense<0.000000e+00> : vector<8x8xf32>
    %23 = tpu.matmul %20, %21, %cst_7 {dimension_numbers = #tpu.dot_dimension_numbers<[1], [1], [0], [0], [0, 0, 1, 0], [], []>} : vector<8x8xf32>, vector<8x8xf32>, vector<8x8xf32> -> vector<8x8xf32>
    %cst_8 = arith.constant dense<0xFF800000> : vector<8xf32>
    %24 = vector.multi_reduction <maximumf>, %23, %cst_8 [1] : vector<8x8xf32> to vector<8xf32>
    %25 = vector.shape_cast %24 : vector<8xf32> to vector<8x1xf32>
    %26 = vector.broadcast %25 : vector<8x1xf32> to vector<8x8xf32>
    %27 = arith.subf %23, %26 : vector<8x8xf32>
    %28 = math.exp %27 : vector<8x8xf32>
    %cst_9 = arith.constant dense<0.000000e+00> : vector<8xf32>
    %29 = vector.multi_reduction <add>, %28, %cst_9 [1] : vector<8x8xf32> to vector<8xf32>
    %30 = vector.shape_cast %29 : vector<8xf32> to vector<8x1xf32>
    %31 = vector.broadcast %30 : vector<8x1xf32> to vector<8x8xf32>
    %32 = arith.divf %28, %31 : vector<8x8xf32>
    %cst_10 = arith.constant dense<0.000000e+00> : vector<8x8xf32>
    %33 = tpu.matmul %32, %22, %cst_10 {dimension_numbers = #tpu.dot_dimension_numbers<[1], [0], [0], [1], [0, 0, 1, 1], [], []>} : vector<8x8xf32>, vector<8x8xf32>, vector<8x8xf32> -> vector<8x8xf32>
    %34 = vector.extract_strided_slice %17 {offsets = [8, 0], sizes = [8, 8], strides = [1, 1]} : vector<16x32xf32> to vector<8x8xf32>
    %35 = vector.extract_strided_slice %18 {offsets = [8, 0], sizes = [8, 8], strides = [1, 1]} : vector<16x32xf32> to vector<8x8xf32>
    %36 = vector.extract_strided_slice %19 {offsets = [8, 0], sizes = [8, 8], strides = [1, 1]} : vector<16x32xf32> to vector<8x8xf32>
    %cst_11 = arith.constant dense<0.000000e+00> : vector<8x8xf32>
    %37 = tpu.matmul %34, %35, %cst_11 {dimension_numbers = #tpu.dot_dimension_numbers<[1], [1], [0], [0], [0, 0, 1, 0], [], []>} : vector<8x8xf32>, vector<8x8xf32>, vector<8x8xf32> -> vector<8x8xf32>
    %cst_12 = arith.constant dense<0xFF800000> : vector<8xf32>
    %38 = vector.multi_reduction <maximumf>, %37, %cst_12 [1] : vector<8x8xf32> to vector<8xf32>
    %39 = vector.shape_cast %38 : vector<8xf32> to vector<8x1xf32>
    %40 = vector.broadcast %39 : vector<8x1xf32> to vector<8x8xf32>
    %41 = arith.subf %37, %40 : vector<8x8xf32>
    %42 = math.exp %41 : vector<8x8xf32>
    %cst_13 = arith.constant dense<0.000000e+00> : vector<8xf32>
    %43 = vector.multi_reduction <add>, %42, %cst_13 [1] : vector<8x8xf32> to vector<8xf32>
    %44 = vector.shape_cast %43 : vector<8xf32> to vector<8x1xf32>
    %45 = vector.broadcast %44 : vector<8x1xf32> to vector<8x8xf32>
    %46 = arith.divf %42, %45 : vector<8x8xf32>
    %cst_14 = arith.constant dense<0.000000e+00> : vector<8x8xf32>
    %47 = tpu.matmul %46, %36, %cst_14 {dimension_numbers = #tpu.dot_dimension_numbers<[1], [0], [0], [1], [0, 0, 1, 1], [], []>} : vector<8x8xf32>, vector<8x8xf32>, vector<8x8xf32> -> vector<8x8xf32>
    %48 = tpu.concatenate %33, %47 in 0 : vector<8x8xf32>, vector<8x8xf32> -> vector<16x8xf32>
    %49 = vector.extract_strided_slice %17 {offsets = [0, 8], sizes = [8, 8], strides = [1, 1]} : vector<16x32xf32> to vector<8x8xf32>
    %50 = vector.extract_strided_slice %18 {offsets = [0, 8], sizes = [8, 8], strides = [1, 1]} : vector<16x32xf32> to vector<8x8xf32>
    %51 = vector.extract_strided_slice %19 {offsets = [0, 8], sizes = [8, 8], strides = [1, 1]} : vector<16x32xf32> to vector<8x8xf32>
    %cst_15 = arith.constant dense<0.000000e+00> : vector<8x8xf32>
    %52 = tpu.matmul %49, %50, %cst_15 {dimension_numbers = #tpu.dot_dimension_numbers<[1], [1], [0], [0], [0, 0, 1, 0], [], []>} : vector<8x8xf32>, vector<8x8xf32>, vector<8x8xf32> -> vector<8x8xf32>
    %cst_16 = arith.constant dense<0xFF800000> : vector<8xf32>
    %53 = vector.multi_reduction <maximumf>, %52, %cst_16 [1] : vector<8x8xf32> to vector<8xf32>
    %54 = vector.shape_cast %53 : vector<8xf32> to vector<8x1xf32>
    %55 = vector.broadcast %54 : vector<8x1xf32> to vector<8x8xf32>
    %56 = arith.subf %52, %55 : vector<8x8xf32>
    %57 = math.exp %56 : vector<8x8xf32>
    %cst_17 = arith.constant dense<0.000000e+00> : vector<8xf32>
    %58 = vector.multi_reduction <add>, %57, %cst_17 [1] : vector<8x8xf32> to vector<8xf32>
    %59 = vector.shape_cast %58 : vector<8xf32> to vector<8x1xf32>
    %60 = vector.broadcast %59 : vector<8x1xf32> to vector<8x8xf32>
    %61 = arith.divf %57, %60 : vector<8x8xf32>
    %cst_18 = arith.constant dense<0.000000e+00> : vector<8x8xf32>
    %62 = tpu.matmul %61, %51, %cst_18 {dimension_numbers = #tpu.dot_dimension_numbers<[1], [0], [0], [1], [0, 0, 1, 1], [], []>} : vector<8x8xf32>, vector<8x8xf32>, vector<8x8xf32> -> vector<8x8xf32>
    %63 = vector.extract_strided_slice %17 {offsets = [8, 8], sizes = [8, 8], strides = [1, 1]} : vector<16x32xf32> to vector<8x8xf32>
    %64 = vector.extract_strided_slice %18 {offsets = [8, 8], sizes = [8, 8], strides = [1, 1]} : vector<16x32xf32> to vector<8x8xf32>
    %65 = vector.extract_strided_slice %19 {offsets = [8, 8], sizes = [8, 8], strides = [1, 1]} : vector<16x32xf32> to vector<8x8xf32>
    %cst_19 = arith.constant dense<0.000000e+00> : vector<8x8xf32>
    %66 = tpu.matmul %63, %64, %cst_19 {dimension_numbers = #tpu.dot_dimension_numbers<[1], [1], [0], [0], [0, 0, 1, 0], [], []>} : vector<8x8xf32>, vector<8x8xf32>, vector<8x8xf32> -> vector<8x8xf32>
    %cst_20 = arith.constant dense<0xFF800000> : vector<8xf32>
    %67 = vector.multi_reduction <maximumf>, %66, %cst_20 [1] : vector<8x8xf32> to vector<8xf32>
    %68 = vector.shape_cast %67 : vector<8xf32> to vector<8x1xf32>
    %69 = vector.broadcast %68 : vector<8x1xf32> to vector<8x8xf32>
    %70 = arith.subf %66, %69 : vector<8x8xf32>
    %71 = math.exp %70 : vector<8x8xf32>
    %cst_21 = arith.constant dense<0.000000e+00> : vector<8xf32>
    %72 = vector.multi_reduction <add>, %71, %cst_21 [1] : vector<8x8xf32> to vector<8xf32>
    %73 = vector.shape_cast %72 : vector<8xf32> to vector<8x1xf32>
    %74 = vector.broadcast %73 : vector<8x1xf32> to vector<8x8xf32>
    %75 = arith.divf %71, %74 : vector<8x8xf32>
    %cst_22 = arith.constant dense<0.000000e+00> : vector<8x8xf32>
    %76 = tpu.matmul %75, %65, %cst_22 {dimension_numbers = #tpu.dot_dimension_numbers<[1], [0], [0], [1], [0, 0, 1, 1], [], []>} : vector<8x8xf32>, vector<8x8xf32>, vector<8x8xf32> -> vector<8x8xf32>
    %77 = tpu.concatenate %62, %76 in 0 : vector<8x8xf32>, vector<8x8xf32> -> vector<16x8xf32>
    %78 = vector.extract_strided_slice %17 {offsets = [0, 16], sizes = [8, 8], strides = [1, 1]} : vector<16x32xf32> to vector<8x8xf32>
    %79 = vector.extract_strided_slice %18 {offsets = [0, 16], sizes = [8, 8], strides = [1, 1]} : vector<16x32xf32> to vector<8x8xf32>
    %80 = vector.extract_strided_slice %19 {offsets = [0, 16], sizes = [8, 8], strides = [1, 1]} : vector<16x32xf32> to vector<8x8xf32>
    %cst_23 = arith.constant dense<0.000000e+00> : vector<8x8xf32>
    %81 = tpu.matmul %78, %79, %cst_23 {dimension_numbers = #tpu.dot_dimension_numbers<[1], [1], [0], [0], [0, 0, 1, 0], [], []>} : vector<8x8xf32>, vector<8x8xf32>, vector<8x8xf32> -> vector<8x8xf32>
    %cst_24 = arith.constant dense<0xFF800000> : vector<8xf32>
    %82 = vector.multi_reduction <maximumf>, %81, %cst_24 [1] : vector<8x8xf32> to vector<8xf32>
    %83 = vector.shape_cast %82 : vector<8xf32> to vector<8x1xf32>
    %84 = vector.broadcast %83 : vector<8x1xf32> to vector<8x8xf32>
    %85 = arith.subf %81, %84 : vector<8x8xf32>
    %86 = math.exp %85 : vector<8x8xf32>
    %cst_25 = arith.constant dense<0.000000e+00> : vector<8xf32>
    %87 = vector.multi_reduction <add>, %86, %cst_25 [1] : vector<8x8xf32> to vector<8xf32>
    %88 = vector.shape_cast %87 : vector<8xf32> to vector<8x1xf32>
    %89 = vector.broadcast %88 : vector<8x1xf32> to vector<8x8xf32>
    %90 = arith.divf %86, %89 : vector<8x8xf32>
    %cst_26 = arith.constant dense<0.000000e+00> : vector<8x8xf32>
    %91 = tpu.matmul %90, %80, %cst_26 {dimension_numbers = #tpu.dot_dimension_numbers<[1], [0], [0], [1], [0, 0, 1, 1], [], []>} : vector<8x8xf32>, vector<8x8xf32>, vector<8x8xf32> -> vector<8x8xf32>
    %92 = vector.extract_strided_slice %17 {offsets = [8, 16], sizes = [8, 8], strides = [1, 1]} : vector<16x32xf32> to vector<8x8xf32>
    %93 = vector.extract_strided_slice %18 {offsets = [8, 16], sizes = [8, 8], strides = [1, 1]} : vector<16x32xf32> to vector<8x8xf32>
    %94 = vector.extract_strided_slice %19 {offsets = [8, 16], sizes = [8, 8], strides = [1, 1]} : vector<16x32xf32> to vector<8x8xf32>
    %cst_27 = arith.constant dense<0.000000e+00> : vector<8x8xf32>
    %95 = tpu.matmul %92, %93, %cst_27 {dimension_numbers = #tpu.dot_dimension_numbers<[1], [1], [0], [0], [0, 0, 1, 0], [], []>} : vector<8x8xf32>, vector<8x8xf32>, vector<8x8xf32> -> vector<8x8xf32>
    %cst_28 = arith.constant dense<0xFF800000> : vector<8xf32>
    %96 = vector.multi_reduction <maximumf>, %95, %cst_28 [1] : vector<8x8xf32> to vector<8xf32>
    %97 = vector.shape_cast %96 : vector<8xf32> to vector<8x1xf32>
    %98 = vector.broadcast %97 : vector<8x1xf32> to vector<8x8xf32>
    %99 = arith.subf %95, %98 : vector<8x8xf32>
    %100 = math.exp %99 : vector<8x8xf32>
    %cst_29 = arith.constant dense<0.000000e+00> : vector<8xf32>
    %101 = vector.multi_reduction <add>, %100, %cst_29 [1] : vector<8x8xf32> to vector<8xf32>
    %102 = vector.shape_cast %101 : vector<8xf32> to vector<8x1xf32>
    %103 = vector.broadcast %102 : vector<8x1xf32> to vector<8x8xf32>
    %104 = arith.divf %100, %103 : vector<8x8xf32>
    %cst_30 = arith.constant dense<0.000000e+00> : vector<8x8xf32>
    %105 = tpu.matmul %104, %94, %cst_30 {dimension_numbers = #tpu.dot_dimension_numbers<[1], [0], [0], [1], [0, 0, 1, 1], [], []>} : vector<8x8xf32>, vector<8x8xf32>, vector<8x8xf32> -> vector<8x8xf32>
    %106 = tpu.concatenate %91, %105 in 0 : vector<8x8xf32>, vector<8x8xf32> -> vector<16x8xf32>
    %107 = vector.extract_strided_slice %17 {offsets = [0, 24], sizes = [8, 8], strides = [1, 1]} : vector<16x32xf32> to vector<8x8xf32>
    %108 = vector.extract_strided_slice %18 {offsets = [0, 24], sizes = [8, 8], strides = [1, 1]} : vector<16x32xf32> to vector<8x8xf32>
    %109 = vector.extract_strided_slice %19 {offsets = [0, 24], sizes = [8, 8], strides = [1, 1]} : vector<16x32xf32> to vector<8x8xf32>
    %cst_31 = arith.constant dense<0.000000e+00> : vector<8x8xf32>
    %110 = tpu.matmul %107, %108, %cst_31 {dimension_numbers = #tpu.dot_dimension_numbers<[1], [1], [0], [0], [0, 0, 1, 0], [], []>} : vector<8x8xf32>, vector<8x8xf32>, vector<8x8xf32> -> vector<8x8xf32>
    %cst_32 = arith.constant dense<0xFF800000> : vector<8xf32>
    %111 = vector.multi_reduction <maximumf>, %110, %cst_32 [1] : vector<8x8xf32> to vector<8xf32>
    %112 = vector.shape_cast %111 : vector<8xf32> to vector<8x1xf32>
    %113 = vector.broadcast %112 : vector<8x1xf32> to vector<8x8xf32>
    %114 = arith.subf %110, %113 : vector<8x8xf32>
    %115 = math.exp %114 : vector<8x8xf32>
    %cst_33 = arith.constant dense<0.000000e+00> : vector<8xf32>
    %116 = vector.multi_reduction <add>, %115, %cst_33 [1] : vector<8x8xf32> to vector<8xf32>
    %117 = vector.shape_cast %116 : vector<8xf32> to vector<8x1xf32>
    %118 = vector.broadcast %117 : vector<8x1xf32> to vector<8x8xf32>
    %119 = arith.divf %115, %118 : vector<8x8xf32>
    %cst_34 = arith.constant dense<0.000000e+00> : vector<8x8xf32>
    %120 = tpu.matmul %119, %109, %cst_34 {dimension_numbers = #tpu.dot_dimension_numbers<[1], [0], [0], [1], [0, 0, 1, 1], [], []>} : vector<8x8xf32>, vector<8x8xf32>, vector<8x8xf32> -> vector<8x8xf32>
    %121 = vector.extract_strided_slice %17 {offsets = [8, 24], sizes = [8, 8], strides = [1, 1]} : vector<16x32xf32> to vector<8x8xf32>
    %122 = vector.extract_strided_slice %18 {offsets = [8, 24], sizes = [8, 8], strides = [1, 1]} : vector<16x32xf32> to vector<8x8xf32>
    %123 = vector.extract_strided_slice %19 {offsets = [8, 24], sizes = [8, 8], strides = [1, 1]} : vector<16x32xf32> to vector<8x8xf32>
    %cst_35 = arith.constant dense<0.000000e+00> : vector<8x8xf32>
    %124 = tpu.matmul %121, %122, %cst_35 {dimension_numbers = #tpu.dot_dimension_numbers<[1], [1], [0], [0], [0, 0, 1, 0], [], []>} : vector<8x8xf32>, vector<8x8xf32>, vector<8x8xf32> -> vector<8x8xf32>
    %cst_36 = arith.constant dense<0xFF800000> : vector<8xf32>
    %125 = vector.multi_reduction <maximumf>, %124, %cst_36 [1] : vector<8x8xf32> to vector<8xf32>
    %126 = vector.shape_cast %125 : vector<8xf32> to vector<8x1xf32>
    %127 = vector.broadcast %126 : vector<8x1xf32> to vector<8x8xf32>
    %128 = arith.subf %124, %127 : vector<8x8xf32>
    %129 = math.exp %128 : vector<8x8xf32>
    %cst_37 = arith.constant dense<0.000000e+00> : vector<8xf32>
    %130 = vector.multi_reduction <add>, %129, %cst_37 [1] : vector<8x8xf32> to vector<8xf32>
    %131 = vector.shape_cast %130 : vector<8xf32> to vector<8x1xf32>
    %132 = vector.broadcast %131 : vector<8x1xf32> to vector<8x8xf32>
    %133 = arith.divf %129, %132 : vector<8x8xf32>
    %cst_38 = arith.constant dense<0.000000e+00> : vector<8x8xf32>
    %134 = tpu.matmul %133, %123, %cst_38 {dimension_numbers = #tpu.dot_dimension_numbers<[1], [0], [0], [1], [0, 0, 1, 1], [], []>} : vector<8x8xf32>, vector<8x8xf32>, vector<8x8xf32> -> vector<8x8xf32>
    %135 = tpu.concatenate %120, %134 in 0 : vector<8x8xf32>, vector<8x8xf32> -> vector<16x8xf32>
    %136 = tpu.concatenate %48, %77, %106, %135 in 1 : vector<16x8xf32>, vector<16x8xf32>, vector<16x8xf32>, vector<16x8xf32> -> vector<16x32xf32>
    %cst_39 = arith.constant dense<0.000000e+00> : vector<16x32xf32>
    %137 = tpu.matmul %136, %2, %cst_39 {dimension_numbers = #tpu.dot_dimension_numbers<[1], [0], [0], [1], [0, 0, 1, 1], [], []>} : vector<16x32xf32>, vector<32x32xf32>, vector<16x32xf32> -> vector<16x32xf32>
    %138 = vector.broadcast %8 : vector<1x32xf32> to vector<16x32xf32>
    %139 = arith.addf %137, %138 : vector<16x32xf32>
    %140 = arith.addf %0, %139 : vector<16x32xf32>
    %cst_40 = arith.constant dense<0.000000e+00> : vector<16xf32>
    %141 = vector.multi_reduction <add>, %140, %cst_40 [1] : vector<16x32xf32> to vector<16xf32>
    %142 = vector.shape_cast %141 : vector<16xf32> to vector<16x1xf32>
    %cst_41 = arith.constant 3.200000e+01 : f32
    %143 = vector.broadcast %cst_41 : f32 to vector<16x1xf32>
    %144 = arith.divf %142, %143 : vector<16x1xf32>
    %145 = arith.mulf %140, %140 : vector<16x32xf32>
    %cst_42 = arith.constant dense<0.000000e+00> : vector<16xf32>
    %146 = vector.multi_reduction <add>, %145, %cst_42 [1] : vector<16x32xf32> to vector<16xf32>
    %147 = vector.shape_cast %146 : vector<16xf32> to vector<16x1xf32>
    %cst_43 = arith.constant 3.200000e+01 : f32
    %148 = vector.broadcast %cst_43 : f32 to vector<16x1xf32>
    %149 = arith.divf %147, %148 : vector<16x1xf32>
    %150 = arith.mulf %144, %144 : vector<16x1xf32>
    %151 = arith.subf %149, %150 : vector<16x1xf32>
    %152 = vector.broadcast %144 : vector<16x1xf32> to vector<16x32xf32>
    %153 = arith.subf %140, %152 : vector<16x32xf32>
    %cst_44 = arith.constant 9.99999974E-6 : f32
    %154 = vector.broadcast %cst_44 : f32 to vector<16x1xf32>
    %155 = arith.addf %151, %154 : vector<16x1xf32>
    %156 = math.rsqrt %155 : vector<16x1xf32>
    %157 = vector.broadcast %156 : vector<16x1xf32> to vector<16x32xf32>
    %158 = arith.mulf %153, %157 : vector<16x32xf32>
    %159 = vector.broadcast %10 : vector<1x32xf32> to vector<16x32xf32>
    %160 = arith.mulf %158, %159 : vector<16x32xf32>
    %161 = vector.broadcast %11 : vector<1x32xf32> to vector<16x32xf32>
    %162 = arith.addf %160, %161 : vector<16x32xf32>
    %cst_45 = arith.constant dense<0.000000e+00> : vector<16x64xf32>
    %163 = tpu.matmul %162, %3, %cst_45 {dimension_numbers = #tpu.dot_dimension_numbers<[1], [0], [0], [1], [0, 0, 1, 1], [], []>} : vector<16x32xf32>, vector<32x64xf32>, vector<16x64xf32> -> vector<16x64xf32>
    %164 = vector.broadcast %7 : vector<1x64xf32> to vector<16x64xf32>
    %165 = arith.addf %163, %164 : vector<16x64xf32>
    %cst_46 = arith.constant 0.000000e+00 : f32
    %166 = vector.broadcast %cst_46 : f32 to vector<16x64xf32>
    %167 = arith.maximumf %165, %166 : vector<16x64xf32>
    %cst_47 = arith.constant dense<0.000000e+00> : vector<16x32xf32>
    %168 = tpu.matmul %167, %4, %cst_47 {dimension_numbers = #tpu.dot_dimension_numbers<[1], [0], [0], [1], [0, 0, 1, 1], [], []>} : vector<16x64xf32>, vector<64x32xf32>, vector<16x32xf32> -> vector<16x32xf32>
    %169 = vector.broadcast %9 : vector<1x32xf32> to vector<16x32xf32>
    %170 = arith.addf %168, %169 : vector<16x32xf32>
    %171 = arith.addf %162, %170 : vector<16x32xf32>
    %cst_48 = arith.constant dense<0.000000e+00> : vector<16xf32>
    %172 = vector.multi_reduction <add>, %171, %cst_48 [1] : vector<16x32xf32> to vector<16xf32>
    %173 = vector.shape_cast %172 : vector<16xf32> to vector<16x1xf32>
    %cst_49 = arith.constant 3.200000e+01 : f32
    %174 = vector.broadcast %cst_49 : f32 to vector<16x1xf32>
    %175 = arith.divf %173, %174 : vector<16x1xf32>
    %176 = arith.mulf %171, %171 : vector<16x32xf32>
    %cst_50 = arith.constant dense<0.000000e+00> : vector<16xf32>
    %177 = vector.multi_reduction <add>, %176, %cst_50 [1] : vector<16x32xf32> to vector<16xf32>
    %178 = vector.shape_cast %177 : vector<16xf32> to vector<16x1xf32>
    %cst_51 = arith.constant 3.200000e+01 : f32
    %179 = vector.broadcast %cst_51 : f32 to vector<16x1xf32>
    %180 = arith.divf %178, %179 : vector<16x1xf32>
    %181 = arith.mulf %175, %175 : vector<16x1xf32>
    %182 = arith.subf %180, %181 : vector<16x1xf32>
    %183 = vector.broadcast %175 : vector<16x1xf32> to vector<16x32xf32>
    %184 = arith.subf %171, %183 : vector<16x32xf32>
    %cst_52 = arith.constant 9.99999974E-6 : f32
    %185 = vector.broadcast %cst_52 : f32 to vector<16x1xf32>
    %186 = arith.addf %182, %185 : vector<16x1xf32>
    %187 = math.rsqrt %186 : vector<16x1xf32>
    %188 = vector.broadcast %187 : vector<16x1xf32> to vector<16x32xf32>
    %189 = arith.mulf %184, %188 : vector<16x32xf32>
    %190 = vector.broadcast %12 : vector<1x32xf32> to vector<16x32xf32>
    %191 = arith.mulf %189, %190 : vector<16x32xf32>
    %192 = vector.broadcast %13 : vector<1x32xf32> to vector<16x32xf32>
    %193 = arith.addf %191, %192 : vector<16x32xf32>
    %c0_53 = arith.constant 0 : index
    %c0_54 = arith.constant 0 : index
    %194 = vector.load %arg2[%c0_53, %c0_54] : memref<16x32xf32, #tpu.memory_space<vmem>>, vector<16x32xf32>
    tpu.vector_store %arg2[%c0_53, %c0_54], %193 {strides = array<i32>} : memref<16x32xf32, #tpu.memory_space<vmem>>, vector<16x32xf32>,
    return
  }
}

</mosaic_0001>

<llo_original>
// kernel: tpu_custom_call.1
$region0: #{tpu_custom_call.1}
  #allocation0 [shape = 'u32[]', space=smem, size = 0x4, offset = 0x4, fixed_abs, tag = 'smem constant byte address 0x4 - core index']
  #allocation1 [shape = 'u32[144,128]{1,0:T(1,128)}', space=vmem, size = 0x12000, scoped, tag = 'internal scratch']
  %s0 = inlined_call_operand.hbm [shape: f32[16,32], index: 0, kind: input, shape index: {}]
  %s1 = inlined_call_operand.hbm [shape: f32[168,96], index: 1, kind: input, shape index: {}]
  %s2 = inlined_call_operand.hbm [shape: f32[16,32], index: 2, kind: output, shape index: {}]
  %s3 = sld [smem:[#allocation0]]
  $region26: #{tpu_custom_call.1} parent=0
    _
  %s5 = ssub.s32 1, %s3
  %s6 = scalar_select 0, %s5, %s3
  $region1: #{tpu_custom_call.1} parent=0
    #allocation2 [shape = 'u8[8192]{0}', space=vmem, size = 0x2000, scoped, tag = 'input window, operand 0, single buffered']
    #allocation3 [shape = 's32[1]{0}', space=sflag, size = 0x4, scoped, tag = 'scoped memory for tpu_custom_call.1']
    #allocation4 [shape = 's32[1]{0}', space=sflag, size = 0x4, scoped, tag = 'scoped memory for tpu_custom_call.1']
    #allocation5 [shape = 'u8[86016]{0}', space=vmem, size = 0x15000, scoped, tag = 'input window, operand 1, single buffered']
    #allocation6 [shape = 's32[1]{0}', space=sflag, size = 0x4, scoped, tag = 'scoped memory for tpu_custom_call.1']
    #allocation7 [shape = 'u8[8192]{0}', space=vmem, size = 0x2000, scoped, tag = 'output window, operand 0, single buffered']
    %7 = vsyncpa [#allocation3], 0
    %8 = vsyncpa [#allocation6], 0
    %9 = vsyncpa [#allocation4], 0
    // Predicated region
    $region2: #{tpu_custom_call.1} parent=1 // pred_check
      _
    $region3: #{tpu_custom_call.1} parent=1 // pred_check_branch
      %11 = sbr.rel (0) target = $region5
    $region4: #{tpu_custom_call.1} parent=1 // pred_region
      %s13 = ssub.s32 256, 256
      %14 = vsyncadd [#allocation3], %s13
      %s15 = sshll.u32 [#allocation2], 4
      %s16 = int_to_ptr.vmem [resolvable:$true] %s15
      %21 = dma.hbm_to_vmem [thread:$0]  %s0, 256, %s16, [#allocation3], 128, 128, 8
    $region5: #{tpu_custom_call.1} parent=1 // pred_fallthru
      _
    // Predicated region
    $region6: #{tpu_custom_call.1} parent=1 // pred_check
      _
    $region7: #{tpu_custom_call.1} parent=1 // pred_check_branch
      %23 = sbr.rel (0) target = $region9
    $region8: #{tpu_custom_call.1} parent=1 // pred_region
      %s25 = ssub.s32 2688, 2688
      %26 = vsyncadd [#allocation6], %s25
      %s27 = sshll.u32 [#allocation5], 4
      %s28 = int_to_ptr.vmem [resolvable:$true] %s27
      %33 = dma.hbm_to_vmem [thread:$0]  %s1, 2688, %s28, [#allocation6], 128, 128, 8
    $region9: #{tpu_custom_call.1} parent=1 // pred_fallthru
      _
    // Predicated region
    $region10: #{tpu_custom_call.1} parent=1 // pred_check
      _
    $region11: #{tpu_custom_call.1} parent=1 // pred_check_branch
      %35 = sbr.rel (0) target = $region13
    $region12: #{tpu_custom_call.1} parent=1 // pred_region
      %36 = dma.done [#allocation3], 256
    $region13: #{tpu_custom_call.1} parent=1 // pred_fallthru
      _
    // Predicated region
    $region14: #{tpu_custom_call.1} parent=1 // pred_check
      _
    $region15: #{tpu_custom_call.1} parent=1 // pred_check_branch
      %38 = sbr.rel (0) target = $region17
    $region16: #{tpu_custom_call.1} parent=1 // pred_region
      %39 = dma.done [#allocation6], 2688
    $region17: #{tpu_custom_call.1} parent=1 // pred_fallthru
      _
    %v40 = vld [vmem:[#allocation2] sm:$0xff]
    %v41 = vld [vmem:[#allocation2 + $0x8] sm:$0xff]
    %v42 = vld [vmem:[#allocation5] sm:$0xff]
    %v43 = vld [vmem:[#allocation5 + $0x8] sm:$0xff]
    %v44 = vld [vmem:[#allocation5 + $0x10] sm:$0xff]
    %v45 = vld [vmem:[#allocation5 + $0x18] sm:$0xff]
    %v46 = vld [vmem:[#allocation5 + $0x20] sm:$0xff]
    %v47 = vld [vmem:[#allocation5 + $0x28] sm:$0xff]
    %v48 = vld [vmem:[#allocation5 + $0x30] sm:$0xff]
    %v49 = vld [vmem:[#allocation5 + $0x38] sm:$0xff]
    %v50 = vld [vmem:[#allocation5 + $0x40] sm:$0xff]
    %v51 = vld [vmem:[#allocation5 + $0x48] sm:$0xff]
    %v52 = vld [vmem:[#allocation5 + $0x50] sm:$0xff]
    %v53 = vld [vmem:[#allocation5 + $0x58] sm:$0xff]
    %v54 = vld [vmem:[#allocation5 + $0x60] sm:$0xff]
    %v55 = vld [vmem:[#allocation5 + $0x68] sm:$0xff]
    %v56 = vld [vmem:[#allocation5 + $0x70] sm:$0xff]
    %v57 = vld [vmem:[#allocation5 + $0x78] sm:$0xff]
    %v58 = vld [vmem:[#allocation5 + $0x80] sm:$0xff]
    %v59 = vld [vmem:[#allocation5 + $0x88] sm:$0xff]
    %v60 = vld [vmem:[#allocation5 + $0x90] sm:$0xff]
    %v61 = vld [vmem:[#allocation5 + $0x98] sm:$0xff]
    %v62 = vld [vmem:[#allocation5 + $0xa0] sm:$0xff]
    %v63 = vlaneseq
    %v64 = vshrl.u32 %v63, 7
    %v65 = vsub.s32 0, %v64
    %v66 = vrot.slane %v62, %v65
    %vm67 = vcmask 261120
    %v69 = vsel %vm67, %v40, 0
    %v72 = vsel %vm67, %v41, 0
    %74 = vmatprep.subr.mxu0 0.0
    %75 = vmatpush1.msra.mxu0 %v42
    %76 = vmatprep.subr.mxu0 0.0
    %77 = vmatpush1.msra.mxu0 %v43
    %78 = vmatprep.subr.mxu0 0.0
    %79 = vmatpush1.msra.mxu0 %v44
    %80 = vmatprep.subr.mxu0 0.0
    %81 = vmatpush1.msra.mxu0 %v45
    %82 = vmatprep.subr.mxu0 0.0
    %83 = vmatpush1.msra.mxu0 0.0
    %84 = vmatprep.subr.mxu0 0.0
    %85 = vmatpush1.msra.mxu0 0.0
    %86 = vmatprep.subr.mxu0 0.0
    %87 = vmatpush1.msra.mxu0 0.0
    %88 = vmatprep.subr.mxu0 0.0
    %89 = vmatpush1.msra.mxu0 0.0
    %90 = vmatprep.subr.mxu0 0.0
    %91 = vmatpush1.msra.mxu0 0.0
    %92 = vmatprep.subr.mxu0 0.0
    %93 = vmatpush1.msra.mxu0 0.0
    %94 = vmatprep.subr.mxu0 0.0
    %95 = vmatpush1.msra.mxu0 0.0
    %96 = vmatprep.subr.mxu0 0.0
    %97 = vmatpush1.msra.mxu0 0.0
    %98 = vmatprep.subr.mxu0 0.0
    %99 = vmatpush1.msra.mxu0 0.0
    %100 = vmatprep.subr.mxu0 0.0
    %101 = vmatpush1.msra.mxu0 0.0
    %102 = vmatprep.subr.mxu0 0.0
    %103 = vmatpush1.msra.mxu0 0.0
    %104 = vmatprep.subr.mxu0 0.0
    %105 = vmatpush1.msra.mxu0 0.0
    %106 = vmatprep.subr.mxu0 0.0
    %107 = vmatpush1.msra.mxu0 0.0
    %108 = vmatprep.subr.mxu0 0.0
    %109 = vmatpush1.msra.mxu0 0.0
    %110 = vmatprep.subr.mxu0 0.0
    %111 = vmatpush1.msra.mxu0 0.0
    %112 = vmatprep.subr.mxu0 0.0
    %113 = vmatpush1.msra.mxu0 0.0
    %114 = vmatprep.subr.mxu0 0.0
    %115 = vmatpush1.msra.mxu0 0.0
    %116 = vmatprep.subr.mxu0 0.0
    %117 = vmatpush1.msra.mxu0 0.0
    %118 = vmatprep.subr.mxu0 0.0
    %119 = vmatpush1.msra.mxu0 0.0
    %120 = vmatprep.subr.mxu0 0.0
    %121 = vmatpush1.msra.mxu0 0.0
    %122 = vmatprep.subr.mxu0 0.0
    %123 = vmatpush1.msra.mxu0 0.0
    %124 = vmatprep.subr.mxu0 0.0
    %125 = vmatpush1.msra.mxu0 0.0
    %126 = vmatprep.subr.mxu0 0.0
    %127 = vmatpush1.msra.mxu0 0.0
    %128 = vmatprep.subr.mxu0 0.0
    %129 = vmatpush1.msra.mxu0 0.0
    %130 = vmatprep.subr.mxu0 0.0
    %131 = vmatpush1.msra.mxu0 0.0
    %132 = vmatprep.subr.mxu0 0.0
    %133 = vmatpush1.msra.mxu0 0.0
    %134 = vmatprep.subr.mxu0 0.0
    %135 = vmatpush1.msra.mxu0 0.0
    %136 = vmatprep.subr.mxu0 0.0
    %137 = vmatpush1.msra.mxu0 0.0
    %138 = vmatprep.mubr.f32.mxu0 0.0
    %139 = vmatmul.mubr.f32.gmra.mrb[0].mxu0 %v69
    %v140 = vpop.f32.mrb[0].mxu0
    %v141 = vadd.f32 %v66, %v140
    %v142 = vpop.f32.mrb[0].mxu0
    %143 = vmatprep.mubr.f32.mxu0 0.0
    %144 = vmatmul.mubr.f32.gmra.mrb[0].mxu0 %v72
    %v145 = vpop.f32.mrb[0].mxu0
    %v146 = vadd.f32 %v66, %v145
    %v147 = vpop.f32.mrb[0].mxu0
    %148 = vdwg.mxu0
    %150 = vrot.lane.b32.xlu0 %v141, 96
    %v151 = vpop.permute.xlu0 %150
    %vm152 = vcmask 64512
    %v153 = vsel %vm152, %v141, 0
    %v155 = vsel %vm152, %v151, 0
    %157 = vmatprep.subr.mxu0 0.0
    %158 = vmatpush1.xpose.msra.mxu0 %v155
    %159 = vmatprep.subr.mxu0 0.0
    %160 = vmatpush1.xpose.msra.mxu0 0.0
    %161 = vmatprep.subr.mxu0 0.0
    %162 = vmatpush1.xpose.msra.mxu0 0.0
    %163 = vmatprep.subr.mxu0 0.0
    %164 = vmatpush1.xpose.msra.mxu0 0.0
    %165 = vmatprep.subr.mxu0 0.0
    %166 = vmatpush1.xpose.msra.mxu0 0.0
    %167 = vmatprep.subr.mxu0 0.0
    %168 = vmatpush1.xpose.msra.mxu0 0.0
    %169 = vmatprep.subr.mxu0 0.0
    %170 = vmatpush1.xpose.msra.mxu0 0.0
    %171 = vmatprep.subr.mxu0 0.0
    %172 = vmatpush1.xpose.msra.mxu0 0.0
    %173 = vmatprep.subr.mxu0 0.0
    %174 = vmatpush1.xpose.msra.mxu0 0.0
    %175 = vmatprep.subr.mxu0 0.0
    %176 = vmatpush1.xpose.msra.mxu0 0.0
    %177 = vmatprep.subr.mxu0 0.0
    %178 = vmatpush1.xpose.msra.mxu0 0.0
    %179 = vmatprep.subr.mxu0 0.0
    %180 = vmatpush1.xpose.msra.mxu0 0.0
    %181 = vmatprep.subr.mxu0 0.0
    %182 = vmatpush1.xpose.msra.mxu0 0.0
    %183 = vmatprep.subr.mxu0 0.0
    %184 = vmatpush1.xpose.msra.mxu0 0.0
    %185 = vmatprep.subr.mxu0 0.0
    %186 = vmatpush1.xpose.msra.mxu0 0.0
    %187 = vmatprep.subr.mxu0 0.0
    %188 = vmatpush1.xpose.msra.mxu0 0.0
    %189 = vmatprep.subr.mxu0 0.0
    %190 = vmatpush1.xpose.msra.mxu0 0.0
    %191 = vmatprep.subr.mxu0 0.0
    %192 = vmatpush1.xpose.msra.mxu0 0.0
    %193 = vmatprep.subr.mxu0 0.0
    %194 = vmatpush1.xpose.msra.mxu0 0.0
    %195 = vmatprep.subr.mxu0 0.0
    %196 = vmatpush1.xpose.msra.mxu0 0.0
    %197 = vmatprep.subr.mxu0 0.0
    %198 = vmatpush1.xpose.msra.mxu0 0.0
    %199 = vmatprep.subr.mxu0 0.0
    %200 = vmatpush1.xpose.msra.mxu0 0.0
    %201 = vmatprep.subr.mxu0 0.0
    %202 = vmatpush1.xpose.msra.mxu0 0.0
    %203 = vmatprep.subr.mxu0 0.0
    %204 = vmatpush1.xpose.msra.mxu0 0.0
    %205 = vmatprep.subr.mxu0 0.0
    %206 = vmatpush1.xpose.msra.mxu0 0.0
    %207 = vmatprep.subr.mxu0 0.0
    %208 = vmatpush1.xpose.msra.mxu0 0.0
    %209 = vmatprep.subr.mxu0 0.0
    %210 = vmatpush1.xpose.msra.mxu0 0.0
    %211 = vmatprep.subr.mxu0 0.0
    %212 = vmatpush1.xpose.msra.mxu0 0.0
    %213 = vmatprep.subr.mxu0 0.0
    %214 = vmatpush1.xpose.msra.mxu0 0.0
    %215 = vmatprep.subr.mxu0 0.0
    %216 = vmatpush1.xpose.msra.mxu0 0.0
    %217 = vmatprep.subr.mxu0 0.0
    %218 = vmatpush1.xpose.msra.mxu0 0.0
    %219 = vmatprep.subr.mxu0 0.0
    %220 = vmatpush1.xpose.msra.mxu0 0.0
    %221 = vmatprep.mubr.f32.mxu0 0.0
    %222 = vmatmul.mubr.f32.gmra.mrb[0].mxu0 %v153
    %v223 = vpop.f32.mrb[0].mxu0
    %v224 = vadd.f32 0.0, %v223
    %v225 = vpop.f32.mrb[0].mxu0
    %226 = vdwg.mxu0
    %v227 = vsel %vm152, %v224, -inf
    %228 = vmax.xlane.f32.xlu0 %v227
    %v229 = vpop.xlane.xlu0 %228
    %v230 = vsub.f32 %v224, %v229
    %v231 = vmul.f32 %v230, 1.442695
    %v232 = vpow.pop %v231
    %v233 = vsel %vm152, %v232, 0.0
    %234 = vadd.xlane.f32.xlu0 %v233
    %v235 = vpop.xlane.xlu0 %234
    %v236 = vrcp.pop %v235
    %v237 = vmul.f32 %v232, %v236
    %238 = vrot.lane.b32.xlu0 %v141, 64
    %v239 = vpop.permute.xlu0 %238
    %v242 = vsel %vm152, %v237, 0
    %244 = vmatprep.subr.mxu0 0.0
    %245 = vmatpush1.msra.mxu0 %v239
    %246 = vmatprep.subr.mxu0 0.0
    %247 = vmatpush1.msra.mxu0 0.0
    %248 = vmatprep.subr.mxu0 0.0
    %249 = vmatpush1.msra.mxu0 0.0
    %250 = vmatprep.subr.mxu0 0.0
    %251 = vmatpush1.msra.mxu0 0.0
    %252 = vmatprep.subr.mxu0 0.0
    %253 = vmatpush1.msra.mxu0 0.0
    %254 = vmatprep.subr.mxu0 0.0
    %255 = vmatpush1.msra.mxu0 0.0
    %256 = vmatprep.subr.mxu0 0.0
    %257 = vmatpush1.msra.mxu0 0.0
    %258 = vmatprep.subr.mxu0 0.0
    %259 = vmatpush1.msra.mxu0 0.0
    %260 = vmatprep.subr.mxu0 0.0
    %261 = vmatpush1.msra.mxu0 0.0
    %262 = vmatprep.subr.mxu0 0.0
    %263 = vmatpush1.msra.mxu0 0.0
    %264 = vmatprep.subr.mxu0 0.0
    %265 = vmatpush1.msra.mxu0 0.0
    %266 = vmatprep.subr.mxu0 0.0
    %267 = vmatpush1.msra.mxu0 0.0
    %268 = vmatprep.subr.mxu0 0.0
    %269 = vmatpush1.msra.mxu0 0.0
    %270 = vmatprep.subr.mxu0 0.0
    %271 = vmatpush1.msra.mxu0 0.0
    %272 = vmatprep.subr.mxu0 0.0
    %273 = vmatpush1.msra.mxu0 0.0
    %274 = vmatprep.subr.mxu0 0.0
    %275 = vmatpush1.msra.mxu0 0.0
    %276 = vmatprep.subr.mxu0 0.0
    %277 = vmatpush1.msra.mxu0 0.0
    %278 = vmatprep.subr.mxu0 0.0
    %279 = vmatpush1.msra.mxu0 0.0
    %280 = vmatprep.subr.mxu0 0.0
    %281 = vmatpush1.msra.mxu0 0.0
    %282 = vmatprep.subr.mxu0 0.0
    %283 = vmatpush1.msra.mxu0 0.0
    %284 = vmatprep.subr.mxu0 0.0
    %285 = vmatpush1.msra.mxu0 0.0
    %286 = vmatprep.subr.mxu0 0.0
    %287 = vmatpush1.msra.mxu0 0.0
    %288 = vmatprep.subr.mxu0 0.0
    %289 = vmatpush1.msra.mxu0 0.0
    %290 = vmatprep.subr.mxu0 0.0
    %291 = vmatpush1.msra.mxu0 0.0
    %292 = vmatprep.subr.mxu0 0.0
    %293 = vmatpush1.msra.mxu0 0.0
    %294 = vmatprep.subr.mxu0 0.0
    %295 = vmatpush1.msra.mxu0 0.0
    %296 = vmatprep.subr.mxu0 0.0
    %297 = vmatpush1.msra.mxu0 0.0
    %298 = vmatprep.subr.mxu0 0.0
    %299 = vmatpush1.msra.mxu0 0.0
    %300 = vmatprep.subr.mxu0 0.0
    %301 = vmatpush1.msra.mxu0 0.0
    %302 = vmatprep.subr.mxu0 0.0
    %303 = vmatpush1.msra.mxu0 0.0
    %304 = vmatprep.subr.mxu0 0.0
    %305 = vmatpush1.msra.mxu0 0.0
    %306 = vmatprep.subr.mxu0 0.0
    %307 = vmatpush1.msra.mxu0 0.0
    %308 = vmatprep.mubr.f32.mxu0 0.0
    %309 = vmatmul.mubr.f32.gmra.mrb[0].mxu0 %v242
    %v310 = vpop.f32.mrb[0].mxu0
    %v311 = vadd.f32 0.0, %v310
    %v312 = vpop.f32.mrb[0].mxu0
    %313 = vdwg.mxu0
    %315 = vrot.lane.b32.xlu0 %v146, 96
    %v316 = vpop.permute.xlu0 %315
    %v317 = vsel %vm152, %v146, 0
    %v319 = vsel %vm152, %v316, 0
    %321 = vmatprep.subr.mxu0 0.0
    %322 = vmatpush1.xpose.msra.mxu0 %v319
    %323 = vmatprep.subr.mxu0 0.0
    %324 = vmatpush1.xpose.msra.mxu0 0.0
    %325 = vmatprep.subr.mxu0 0.0
    %326 = vmatpush1.xpose.msra.mxu0 0.0
    %327 = vmatprep.subr.mxu0 0.0
    %328 = vmatpush1.xpose.msra.mxu0 0.0
    %329 = vmatprep.subr.mxu0 0.0
    %330 = vmatpush1.xpose.msra.mxu0 0.0
    %331 = vmatprep.subr.mxu0 0.0
    %332 = vmatpush1.xpose.msra.mxu0 0.0
    %333 = vmatprep.subr.mxu0 0.0
    %334 = vmatpush1.xpose.msra.mxu0 0.0
    %335 = vmatprep.subr.mxu0 0.0
    %336 = vmatpush1.xpose.msra.mxu0 0.0
    %337 = vmatprep.subr.mxu0 0.0
    %338 = vmatpush1.xpose.msra.mxu0 0.0
    %339 = vmatprep.subr.mxu0 0.0
    %340 = vmatpush1.xpose.msra.mxu0 0.0
    %341 = vmatprep.subr.mxu0 0.0
    %342 = vmatpush1.xpose.msra.mxu0 0.0
    %343 = vmatprep.subr.mxu0 0.0
    %344 = vmatpush1.xpose.msra.mxu0 0.0
    %345 = vmatprep.subr.mxu0 0.0
    %346 = vmatpush1.xpose.msra.mxu0 0.0
    %347 = vmatprep.subr.mxu0 0.0
    %348 = vmatpush1.xpose.msra.mxu0 0.0
    %349 = vmatprep.subr.mxu0 0.0
    %350 = vmatpush1.xpose.msra.mxu0 0.0
    %351 = vmatprep.subr.mxu0 0.0
    %352 = vmatpush1.xpose.msra.mxu0 0.0
    %353 = vmatprep.subr.mxu0 0.0
    %354 = vmatpush1.xpose.msra.mxu0 0.0
    %355 = vmatprep.subr.mxu0 0.0
    %356 = vmatpush1.xpose.msra.mxu0 0.0
    %357 = vmatprep.subr.mxu0 0.0
    %358 = vmatpush1.xpose.msra.mxu0 0.0
    %359 = vmatprep.subr.mxu0 0.0
    %360 = vmatpush1.xpose.msra.mxu0 0.0
    %361 = vmatprep.subr.mxu0 0.0
    %362 = vmatpush1.xpose.msra.mxu0 0.0
    %363 = vmatprep.subr.mxu0 0.0
    %364 = vmatpush1.xpose.msra.mxu0 0.0
    %365 = vmatprep.subr.mxu0 0.0
    %366 = vmatpush1.xpose.msra.mxu0 0.0
    %367 = vmatprep.subr.mxu0 0.0
    %368 = vmatpush1.xpose.msra.mxu0 0.0
    %369 = vmatprep.subr.mxu0 0.0
    %370 = vmatpush1.xpose.msra.mxu0 0.0
    %371 = vmatprep.subr.mxu0 0.0
    %372 = vmatpush1.xpose.msra.mxu0 0.0
    %373 = vmatprep.subr.mxu0 0.0
    %374 = vmatpush1.xpose.msra.mxu0 0.0
    %375 = vmatprep.subr.mxu0 0.0
    %376 = vmatpush1.xpose.msra.mxu0 0.0
    %377 = vmatprep.subr.mxu0 0.0
    %378 = vmatpush1.xpose.msra.mxu0 0.0
    %379 = vmatprep.subr.mxu0 0.0
    %380 = vmatpush1.xpose.msra.mxu0 0.0
    %381 = vmatprep.subr.mxu0 0.0
    %382 = vmatpush1.xpose.msra.mxu0 0.0
    %383 = vmatprep.subr.mxu0 0.0
    %384 = vmatpush1.xpose.msra.mxu0 0.0
    %385 = vmatprep.mubr.f32.mxu0 0.0
    %386 = vmatmul.mubr.f32.gmra.mrb[0].mxu0 %v317
    %v387 = vpop.f32.mrb[0].mxu0
    %v388 = vadd.f32 0.0, %v387
    %v389 = vpop.f32.mrb[0].mxu0
    %390 = vdwg.mxu0
    %v391 = vsel %vm152, %v388, -inf
    %392 = vmax.xlane.f32.xlu0 %v391
    %v393 = vpop.xlane.xlu0 %392
    %v394 = vsub.f32 %v388, %v393
    %v395 = vmul.f32 %v394, 1.442695
    %v396 = vpow.pop %v395
    %v397 = vsel %vm152, %v396, 0.0
    %398 = vadd.xlane.f32.xlu0 %v397
    %v399 = vpop.xlane.xlu0 %398
    %v400 = vrcp.pop %v399
    %v401 = vmul.f32 %v396, %v400
    %402 = vrot.lane.b32.xlu0 %v146, 64
    %v403 = vpop.permute.xlu0 %402
    %v406 = vsel %vm152, %v401, 0
    %408 = vmatprep.subr.mxu0 0.0
    %409 = vmatpush1.msra.mxu0 %v403
    %410 = vmatprep.subr.mxu0 0.0
    %411 = vmatpush1.msra.mxu0 0.0
    %412 = vmatprep.subr.mxu0 0.0
    %413 = vmatpush1.msra.mxu0 0.0
    %414 = vmatprep.subr.mxu0 0.0
    %415 = vmatpush1.msra.mxu0 0.0
    %416 = vmatprep.subr.mxu0 0.0
    %417 = vmatpush1.msra.mxu0 0.0
    %418 = vmatprep.subr.mxu0 0.0
    %419 = vmatpush1.msra.mxu0 0.0
    %420 = vmatprep.subr.mxu0 0.0
    %421 = vmatpush1.msra.mxu0 0.0
    %422 = vmatprep.subr.mxu0 0.0
    %423 = vmatpush1.msra.mxu0 0.0
    %424 = vmatprep.subr.mxu0 0.0
    %425 = vmatpush1.msra.mxu0 0.0
    %426 = vmatprep.subr.mxu0 0.0
    %427 = vmatpush1.msra.mxu0 0.0
    %428 = vmatprep.subr.mxu0 0.0
    %429 = vmatpush1.msra.mxu0 0.0
    %430 = vmatprep.subr.mxu0 0.0
    %431 = vmatpush1.msra.mxu0 0.0
    %432 = vmatprep.subr.mxu0 0.0
    %433 = vmatpush1.msra.mxu0 0.0
    %434 = vmatprep.subr.mxu0 0.0
    %435 = vmatpush1.msra.mxu0 0.0
    %436 = vmatprep.subr.mxu0 0.0
    %437 = vmatpush1.msra.mxu0 0.0
    %438 = vmatprep.subr.mxu0 0.0
    %439 = vmatpush1.msra.mxu0 0.0
    %440 = vmatprep.subr.mxu0 0.0
    %441 = vmatpush1.msra.mxu0 0.0
    %442 = vmatprep.subr.mxu0 0.0
    %443 = vmatpush1.msra.mxu0 0.0
    %444 = vmatprep.subr.mxu0 0.0
    %445 = vmatpush1.msra.mxu0 0.0
    %446 = vmatprep.subr.mxu0 0.0
    %447 = vmatpush1.msra.mxu0 0.0
    %448 = vmatprep.subr.mxu0 0.0
    %449 = vmatpush1.msra.mxu0 0.0
    %450 = vmatprep.subr.mxu0 0.0
    %451 = vmatpush1.msra.mxu0 0.0
    %452 = vmatprep.subr.mxu0 0.0
    %453 = vmatpush1.msra.mxu0 0.0
    %454 = vmatprep.subr.mxu0 0.0
    %455 = vmatpush1.msra.mxu0 0.0
    %456 = vmatprep.subr.mxu0 0.0
    %457 = vmatpush1.msra.mxu0 0.0
    %458 = vmatprep.subr.mxu0 0.0
    %459 = vmatpush1.msra.mxu0 0.0
    %460 = vmatprep.subr.mxu0 0.0
    %461 = vmatpush1.msra.mxu0 0.0
    %462 = vmatprep.subr.mxu0 0.0
    %463 = vmatpush1.msra.mxu0 0.0
    %464 = vmatprep.subr.mxu0 0.0
    %465 = vmatpush1.msra.mxu0 0.0
    %466 = vmatprep.subr.mxu0 0.0
    %467 = vmatpush1.msra.mxu0 0.0
    %468 = vmatprep.subr.mxu0 0.0
    %469 = vmatpush1.msra.mxu0 0.0
    %470 = vmatprep.subr.mxu0 0.0
    %471 = vmatpush1.msra.mxu0 0.0
    %472 = vmatprep.mubr.f32.mxu0 0.0
    %473 = vmatmul.mubr.f32.gmra.mrb[0].mxu0 %v406
    %v474 = vpop.f32.mrb[0].mxu0
    %v475 = vadd.f32 0.0, %v474
    %v476 = vpop.f32.mrb[0].mxu0
    %477 = vdwg.mxu0
    %478 = vrot.lane.b32.xlu0 %v141, 120
    %v479 = vpop.permute.xlu0 %478
    %480 = vrot.lane.b32.xlu0 %v141, 88
    %v481 = vpop.permute.xlu0 %480
    %v482 = vsel %vm152, %v479, 0
    %v484 = vsel %vm152, %v481, 0
    %486 = vmatprep.subr.mxu0 0.0
    %487 = vmatpush1.xpose.msra.mxu0 %v484
    %488 = vmatprep.subr.mxu0 0.0
    %489 = vmatpush1.xpose.msra.mxu0 0.0
    %490 = vmatprep.subr.mxu0 0.0
    %491 = vmatpush1.xpose.msra.mxu0 0.0
    %492 = vmatprep.subr.mxu0 0.0
    %493 = vmatpush1.xpose.msra.mxu0 0.0
    %494 = vmatprep.subr.mxu0 0.0
    %495 = vmatpush1.xpose.msra.mxu0 0.0
    %496 = vmatprep.subr.mxu0 0.0
    %497 = vmatpush1.xpose.msra.mxu0 0.0
    %498 = vmatprep.subr.mxu0 0.0
    %499 = vmatpush1.xpose.msra.mxu0 0.0
    %500 = vmatprep.subr.mxu0 0.0
    %501 = vmatpush1.xpose.msra.mxu0 0.0
    %502 = vmatprep.subr.mxu0 0.0
    %503 = vmatpush1.xpose.msra.mxu0 0.0
    %504 = vmatprep.subr.mxu0 0.0
    %505 = vmatpush1.xpose.msra.mxu0 0.0
    %506 = vmatprep.subr.mxu0 0.0
    %507 = vmatpush1.xpose.msra.mxu0 0.0
    %508 = vmatprep.subr.mxu0 0.0
    %509 = vmatpush1.xpose.msra.mxu0 0.0
    %510 = vmatprep.subr.mxu0 0.0
    %511 = vmatpush1.xpose.msra.mxu0 0.0
    %512 = vmatprep.subr.mxu0 0.0
    %513 = vmatpush1.xpose.msra.mxu0 0.0
    %514 = vmatprep.subr.mxu0 0.0
    %515 = vmatpush1.xpose.msra.mxu0 0.0
    %516 = vmatprep.subr.mxu0 0.0
    %517 = vmatpush1.xpose.msra.mxu0 0.0
    %518 = vmatprep.subr.mxu0 0.0
    %519 = vmatpush1.xpose.msra.mxu0 0.0
    %520 = vmatprep.subr.mxu0 0.0
    %521 = vmatpush1.xpose.msra.mxu0 0.0
    %522 = vmatprep.subr.mxu0 0.0
    %523 = vmatpush1.xpose.msra.mxu0 0.0
    %524 = vmatprep.subr.mxu0 0.0
    %525 = vmatpush1.xpose.msra.mxu0 0.0
    %526 = vmatprep.subr.mxu0 0.0
    %527 = vmatpush1.xpose.msra.mxu0 0.0
    %528 = vmatprep.subr.mxu0 0.0
    %529 = vmatpush1.xpose.msra.mxu0 0.0
    %530 = vmatprep.subr.mxu0 0.0
    %531 = vmatpush1.xpose.msra.mxu0 0.0
    %532 = vmatprep.subr.mxu0 0.0
    %533 = vmatpush1.xpose.msra.mxu0 0.0
    %534 = vmatprep.subr.mxu0 0.0
    %535 = vmatpush1.xpose.msra.mxu0 0.0
    %536 = vmatprep.subr.mxu0 0.0
    %537 = vmatpush1.xpose.msra.mxu0 0.0
    %538 = vmatprep.subr.mxu0 0.0
    %539 = vmatpush1.xpose.msra.mxu0 0.0
    %540 = vmatprep.subr.mxu0 0.0
    %541 = vmatpush1.xpose.msra.mxu0 0.0
    %542 = vmatprep.subr.mxu0 0.0
    %543 = vmatpush1.xpose.msra.mxu0 0.0
    %544 = vmatprep.subr.mxu0 0.0
    %545 = vmatpush1.xpose.msra.mxu0 0.0
    %546 = vmatprep.subr.mxu0 0.0
    %547 = vmatpush1.xpose.msra.mxu0 0.0
    %548 = vmatprep.subr.mxu0 0.0
    %549 = vmatpush1.xpose.msra.mxu0 0.0
    %550 = vmatprep.mubr.f32.mxu0 0.0
    %551 = vmatmul.mubr.f32.gmra.mrb[0].mxu0 %v482
    %v552 = vpop.f32.mrb[0].mxu0
    %v553 = vadd.f32 0.0, %v552
    %v554 = vpop.f32.mrb[0].mxu0
    %555 = vdwg.mxu0
    %v556 = vsel %vm152, %v553, -inf
    %557 = vmax.xlane.f32.xlu0 %v556
    %v558 = vpop.xlane.xlu0 %557
    %v559 = vsub.f32 %v553, %v558
    %v560 = vmul.f32 %v559, 1.442695
    %v561 = vpow.pop %v560
    %v562 = vsel %vm152, %v561, 0.0
    %563 = vadd.xlane.f32.xlu0 %v562
    %v564 = vpop.xlane.xlu0 %563
    %v565 = vrcp.pop %v564
    %v566 = vmul.f32 %v561, %v565
    %567 = vrot.lane.b32.xlu0 %v141, 56
    %v568 = vpop.permute.xlu0 %567
    %v571 = vsel %vm152, %v566, 0
    %573 = vmatprep.subr.mxu0 0.0
    %574 = vmatpush1.msra.mxu0 %v568
    %575 = vmatprep.subr.mxu0 0.0
    %576 = vmatpush1.msra.mxu0 0.0
    %577 = vmatprep.subr.mxu0 0.0
    %578 = vmatpush1.msra.mxu0 0.0
    %579 = vmatprep.subr.mxu0 0.0
    %580 = vmatpush1.msra.mxu0 0.0
    %581 = vmatprep.subr.mxu0 0.0
    %582 = vmatpush1.msra.mxu0 0.0
    %583 = vmatprep.subr.mxu0 0.0
    %584 = vmatpush1.msra.mxu0 0.0
    %585 = vmatprep.subr.mxu0 0.0
    %586 = vmatpush1.msra.mxu0 0.0
    %587 = vmatprep.subr.mxu0 0.0
    %588 = vmatpush1.msra.mxu0 0.0
    %589 = vmatprep.subr.mxu0 0.0
    %590 = vmatpush1.msra.mxu0 0.0
    %591 = vmatprep.subr.mxu0 0.0
    %592 = vmatpush1.msra.mxu0 0.0
    %593 = vmatprep.subr.mxu0 0.0
    %594 = vmatpush1.msra.mxu0 0.0
    %595 = vmatprep.subr.mxu0 0.0
    %596 = vmatpush1.msra.mxu0 0.0
    %597 = vmatprep.subr.mxu0 0.0
    %598 = vmatpush1.msra.mxu0 0.0
    %599 = vmatprep.subr.mxu0 0.0
    %600 = vmatpush1.msra.mxu0 0.0
    %601 = vmatprep.subr.mxu0 0.0
    %602 = vmatpush1.msra.mxu0 0.0
    %603 = vmatprep.subr.mxu0 0.0
    %604 = vmatpush1.msra.mxu0 0.0
    %605 = vmatprep.subr.mxu0 0.0
    %606 = vmatpush1.msra.mxu0 0.0
    %607 = vmatprep.subr.mxu0 0.0
    %608 = vmatpush1.msra.mxu0 0.0
    %609 = vmatprep.subr.mxu0 0.0
    %610 = vmatpush1.msra.mxu0 0.0
    %611 = vmatprep.subr.mxu0 0.0
    %612 = vmatpush1.msra.mxu0 0.0
    %613 = vmatprep.subr.mxu0 0.0
    %614 = vmatpush1.msra.mxu0 0.0
    %615 = vmatprep.subr.mxu0 0.0
    %616 = vmatpush1.msra.mxu0 0.0
    %617 = vmatprep.subr.mxu0 0.0
    %618 = vmatpush1.msra.mxu0 0.0
    %619 = vmatprep.subr.mxu0 0.0
    %620 = vmatpush1.msra.mxu0 0.0
    %621 = vmatprep.subr.mxu0 0.0
    %622 = vmatpush1.msra.mxu0 0.0
    %623 = vmatprep.subr.mxu0 0.0
    %624 = vmatpush1.msra.mxu0 0.0
    %625 = vmatprep.subr.mxu0 0.0
    %626 = vmatpush1.msra.mxu0 0.0
    %627 = vmatprep.subr.mxu0 0.0
    %628 = vmatpush1.msra.mxu0 0.0
    %629 = vmatprep.subr.mxu0 0.0
    %630 = vmatpush1.msra.mxu0 0.0
    %631 = vmatprep.subr.mxu0 0.0
    %632 = vmatpush1.msra.mxu0 0.0
    %633 = vmatprep.subr.mxu0 0.0
    %634 = vmatpush1.msra.mxu0 0.0
    %635 = vmatprep.subr.mxu0 0.0
    %636 = vmatpush1.msra.mxu0 0.0
    %637 = vmatprep.mubr.f32.mxu0 0.0
    %638 = vmatmul.mubr.f32.gmra.mrb[0].mxu0 %v571
    %v639 = vpop.f32.mrb[0].mxu0
    %v640 = vadd.f32 0.0, %v639
    %v641 = vpop.f32.mrb[0].mxu0
    %642 = vdwg.mxu0
    %643 = vrot.lane.b32.xlu0 %v146, 120
    %v644 = vpop.permute.xlu0 %643
    %645 = vrot.lane.b32.xlu0 %v146, 88
    %v646 = vpop.permute.xlu0 %645
    %v647 = vsel %vm152, %v644, 0
    %v649 = vsel %vm152, %v646, 0
    %651 = vmatprep.subr.mxu0 0.0
    %652 = vmatpush1.xpose.msra.mxu0 %v649
    %653 = vmatprep.subr.mxu0 0.0
    %654 = vmatpush1.xpose.msra.mxu0 0.0
    %655 = vmatprep.subr.mxu0 0.0
    %656 = vmatpush1.xpose.msra.mxu0 0.0
    %657 = vmatprep.subr.mxu0 0.0
    %658 = vmatpush1.xpose.msra.mxu0 0.0
    %659 = vmatprep.subr.mxu0 0.0
    %660 = vmatpush1.xpose.msra.mxu0 0.0
    %661 = vmatprep.subr.mxu0 0.0
    %662 = vmatpush1.xpose.msra.mxu0 0.0
    %663 = vmatprep.subr.mxu0 0.0
    %664 = vmatpush1.xpose.msra.mxu0 0.0
    %665 = vmatprep.subr.mxu0 0.0
    %666 = vmatpush1.xpose.msra.mxu0 0.0
    %667 = vmatprep.subr.mxu0 0.0
    %668 = vmatpush1.xpose.msra.mxu0 0.0
    %669 = vmatprep.subr.mxu0 0.0
    %670 = vmatpush1.xpose.msra.mxu0 0.0
    %671 = vmatprep.subr.mxu0 0.0
    %672 = vmatpush1.xpose.msra.mxu0 0.0
    %673 = vmatprep.subr.mxu0 0.0
    %674 = vmatpush1.xpose.msra.mxu0 0.0
    %675 = vmatprep.subr.mxu0 0.0
    %676 = vmatpush1.xpose.msra.mxu0 0.0
    %677 = vmatprep.subr.mxu0 0.0
    %678 = vmatpush1.xpose.msra.mxu0 0.0
    %679 = vmatprep.subr.mxu0 0.0
    %680 = vmatpush1.xpose.msra.mxu0 0.0
    %681 = vmatprep.subr.mxu0 0.0
    %682 = vmatpush1.xpose.msra.mxu0 0.0
    %683 = vmatprep.subr.mxu0 0.0
    %684 = vmatpush1.xpose.msra.mxu0 0.0
    %685 = vmatprep.subr.mxu0 0.0
    %686 = vmatpush1.xpose.msra.mxu0 0.0
    %687 = vmatprep.subr.mxu0 0.0
    %688 = vmatpush1.xpose.msra.mxu0 0.0
    %689 = vmatprep.subr.mxu0 0.0
    %690 = vmatpush1.xpose.msra.mxu0 0.0
    %691 = vmatprep.subr.mxu0 0.0
    %692 = vmatpush1.xpose.msra.mxu0 0.0
    %693 = vmatprep.subr.mxu0 0.0
    %694 = vmatpush1.xpose.msra.mxu0 0.0
    %695 = vmatprep.subr.mxu0 0.0
    %696 = vmatpush1.xpose.msra.mxu0 0.0
    %697 = vmatprep.subr.mxu0 0.0
    %698 = vmatpush1.xpose.msra.mxu0 0.0
    %699 = vmatprep.subr.mxu0 0.0
    %700 = vmatpush1.xpose.msra.mxu0 0.0
    %701 = vmatprep.subr.mxu0 0.0
    %702 = vmatpush1.xpose.msra.mxu0 0.0
    %703 = vmatprep.subr.mxu0 0.0
    %704 = vmatpush1.xpose.msra.mxu0 0.0
    %705 = vmatprep.subr.mxu0 0.0
    %706 = vmatpush1.xpose.msra.mxu0 0.0
    %707 = vmatprep.subr.mxu0 0.0
    %708 = vmatpush1.xpose.msra.mxu0 0.0
    %709 = vmatprep.subr.mxu0 0.0
    %710 = vmatpush1.xpose.msra.mxu0 0.0
    %711 = vmatprep.subr.mxu0 0.0
    %712 = vmatpush1.xpose.msra.mxu0 0.0
    %713 = vmatprep.subr.mxu0 0.0
    %714 = vmatpush1.xpose.msra.mxu0 0.0
    %715 = vmatprep.mubr.f32.mxu0 0.0
    %716 = vmatmul.mubr.f32.gmra.mrb[0].mxu0 %v647
    %v717 = vpop.f32.mrb[0].mxu0
    %v718 = vadd.f32 0.0, %v717
    %v719 = vpop.f32.mrb[0].mxu0
    %720 = vdwg.mxu0
    %v721 = vsel %vm152, %v718, -inf
    %722 = vmax.xlane.f32.xlu0 %v721
    %v723 = vpop.xlane.xlu0 %722
    %v724 = vsub.f32 %v718, %v723
    %v725 = vmul.f32 %v724, 1.442695
    %v726 = vpow.pop %v725
    %v727 = vsel %vm152, %v726, 0.0
    %728 = vadd.xlane.f32.xlu0 %v727
    %v729 = vpop.xlane.xlu0 %728
    %v730 = vrcp.pop %v729
    %v731 = vmul.f32 %v726, %v730
    %732 = vrot.lane.b32.xlu0 %v146, 56
    %v733 = vpop.permute.xlu0 %732
    %v736 = vsel %vm152, %v731, 0
    %738 = vmatprep.subr.mxu0 0.0
    %739 = vmatpush1.msra.mxu0 %v733
    %740 = vmatprep.subr.mxu0 0.0
    %741 = vmatpush1.msra.mxu0 0.0
    %742 = vmatprep.subr.mxu0 0.0
    %743 = vmatpush1.msra.mxu0 0.0
    %744 = vmatprep.subr.mxu0 0.0
    %745 = vmatpush1.msra.mxu0 0.0
    %746 = vmatprep.subr.mxu0 0.0
    %747 = vmatpush1.msra.mxu0 0.0
    %748 = vmatprep.subr.mxu0 0.0
    %749 = vmatpush1.msra.mxu0 0.0
    %750 = vmatprep.subr.mxu0 0.0
    %751 = vmatpush1.msra.mxu0 0.0
    %752 = vmatprep.subr.mxu0 0.0
    %753 = vmatpush1.msra.mxu0 0.0
    %754 = vmatprep.subr.mxu0 0.0
    %755 = vmatpush1.msra.mxu0 0.0
    %756 = vmatprep.subr.mxu0 0.0
    %757 = vmatpush1.msra.mxu0 0.0
    %758 = vmatprep.subr.mxu0 0.0
    %759 = vmatpush1.msra.mxu0 0.0
    %760 = vmatprep.subr.mxu0 0.0
    %761 = vmatpush1.msra.mxu0 0.0
    %762 = vmatprep.subr.mxu0 0.0
    %763 = vmatpush1.msra.mxu0 0.0
    %764 = vmatprep.subr.mxu0 0.0
    %765 = vmatpush1.msra.mxu0 0.0
    %766 = vmatprep.subr.mxu0 0.0
    %767 = vmatpush1.msra.mxu0 0.0
    %768 = vmatprep.subr.mxu0 0.0
    %769 = vmatpush1.msra.mxu0 0.0
    %770 = vmatprep.subr.mxu0 0.0
    %771 = vmatpush1.msra.mxu0 0.0
    %772 = vmatprep.subr.mxu0 0.0
    %773 = vmatpush1.msra.mxu0 0.0
    %774 = vmatprep.subr.mxu0 0.0
    %775 = vmatpush1.msra.mxu0 0.0
    %776 = vmatprep.subr.mxu0 0.0
    %777 = vmatpush1.msra.mxu0 0.0
    %778 = vmatprep.subr.mxu0 0.0
    %779 = vmatpush1.msra.mxu0 0.0
    %780 = vmatprep.subr.mxu0 0.0
    %781 = vmatpush1.msra.mxu0 0.0
    %782 = vmatprep.subr.mxu0 0.0
    %783 = vmatpush1.msra.mxu0 0.0
    %784 = vmatprep.subr.mxu0 0.0
    %785 = vmatpush1.msra.mxu0 0.0
    %786 = vmatprep.subr.mxu0 0.0
    %787 = vmatpush1.msra.mxu0 0.0
    %788 = vmatprep.subr.mxu0 0.0
    %789 = vmatpush1.msra.mxu0 0.0
    %790 = vmatprep.subr.mxu0 0.0
    %791 = vmatpush1.msra.mxu0 0.0
    %792 = vmatprep.subr.mxu0 0.0
    %793 = vmatpush1.msra.mxu0 0.0
    %794 = vmatprep.subr.mxu0 0.0
    %795 = vmatpush1.msra.mxu0 0.0
    %796 = vmatprep.subr.mxu0 0.0
    %797 = vmatpush1.msra.mxu0 0.0
    %798 = vmatprep.subr.mxu0 0.0
    %799 = vmatpush1.msra.mxu0 0.0
    %800 = vmatprep.subr.mxu0 0.0
    %801 = vmatpush1.msra.mxu0 0.0
    %802 = vmatprep.mubr.f32.mxu0 0.0
    %803 = vmatmul.mubr.f32.gmra.mrb[0].mxu0 %v736
    %v804 = vpop.f32.mrb[0].mxu0
    %v805 = vadd.f32 0.0, %v804
    %v806 = vpop.f32.mrb[0].mxu0
    %807 = vdwg.mxu0
    %808 = vrot.lane.b32.xlu0 %v141, 112
    %v809 = vpop.permute.xlu0 %808
    %810 = vrot.lane.b32.xlu0 %v141, 80
    %v811 = vpop.permute.xlu0 %810
    %v812 = vsel %vm152, %v809, 0
    %v814 = vsel %vm152, %v811, 0
    %816 = vmatprep.subr.mxu0 0.0
    %817 = vmatpush1.xpose.msra.mxu0 %v814
    %818 = vmatprep.subr.mxu0 0.0
    %819 = vmatpush1.xpose.msra.mxu0 0.0
    %820 = vmatprep.subr.mxu0 0.0
    %821 = vmatpush1.xpose.msra.mxu0 0.0
    %822 = vmatprep.subr.mxu0 0.0
    %823 = vmatpush1.xpose.msra.mxu0 0.0
    %824 = vmatprep.subr.mxu0 0.0
    %825 = vmatpush1.xpose.msra.mxu0 0.0
    %826 = vmatprep.subr.mxu0 0.0
    %827 = vmatpush1.xpose.msra.mxu0 0.0
    %828 = vmatprep.subr.mxu0 0.0
    %829 = vmatpush1.xpose.msra.mxu0 0.0
    %830 = vmatprep.subr.mxu0 0.0
    %831 = vmatpush1.xpose.msra.mxu0 0.0
    %832 = vmatprep.subr.mxu0 0.0
    %833 = vmatpush1.xpose.msra.mxu0 0.0
    %834 = vmatprep.subr.mxu0 0.0
    %835 = vmatpush1.xpose.msra.mxu0 0.0
    %836 = vmatprep.subr.mxu0 0.0
    %837 = vmatpush1.xpose.msra.mxu0 0.0
    %838 = vmatprep.subr.mxu0 0.0
    %839 = vmatpush1.xpose.msra.mxu0 0.0
    %840 = vmatprep.subr.mxu0 0.0
    %841 = vmatpush1.xpose.msra.mxu0 0.0
    %842 = vmatprep.subr.mxu0 0.0
    %843 = vmatpush1.xpose.msra.mxu0 0.0
    %844 = vmatprep.subr.mxu0 0.0
    %845 = vmatpush1.xpose.msra.mxu0 0.0
    %846 = vmatprep.subr.mxu0 0.0
    %847 = vmatpush1.xpose.msra.mxu0 0.0
    %848 = vmatprep.subr.mxu0 0.0
    %849 = vmatpush1.xpose.msra.mxu0 0.0
    %850 = vmatprep.subr.mxu0 0.0
    %851 = vmatpush1.xpose.msra.mxu0 0.0
    %852 = vmatprep.subr.mxu0 0.0
    %853 = vmatpush1.xpose.msra.mxu0 0.0
    %854 = vmatprep.subr.mxu0 0.0
    %855 = vmatpush1.xpose.msra.mxu0 0.0
    %856 = vmatprep.subr.mxu0 0.0
    %857 = vmatpush1.xpose.msra.mxu0 0.0
    %858 = vmatprep.subr.mxu0 0.0
    %859 = vmatpush1.xpose.msra.mxu0 0.0
    %860 = vmatprep.subr.mxu0 0.0
    %861 = vmatpush1.xpose.msra.mxu0 0.0
    %862 = vmatprep.subr.mxu0 0.0
    %863 = vmatpush1.xpose.msra.mxu0 0.0
    %864 = vmatprep.subr.mxu0 0.0
    %865 = vmatpush1.xpose.msra.mxu0 0.0
    %866 = vmatprep.subr.mxu0 0.0
    %867 = vmatpush1.xpose.msra.mxu0 0.0
    %868 = vmatprep.subr.mxu0 0.0
    %869 = vmatpush1.xpose.msra.mxu0 0.0
    %870 = vmatprep.subr.mxu0 0.0
    %871 = vmatpush1.xpose.msra.mxu0 0.0
    %872 = vmatprep.subr.mxu0 0.0
    %873 = vmatpush1.xpose.msra.mxu0 0.0
    %874 = vmatprep.subr.mxu0 0.0
    %875 = vmatpush1.xpose.msra.mxu0 0.0
    %876 = vmatprep.subr.mxu0 0.0
    %877 = vmatpush1.xpose.msra.mxu0 0.0
    %878 = vmatprep.subr.mxu0 0.0
    %879 = vmatpush1.xpose.msra.mxu0 0.0
    %880 = vmatprep.mubr.f32.mxu0 0.0
    %881 = vmatmul.mubr.f32.gmra.mrb[0].mxu0 %v812
    %v882 = vpop.f32.mrb[0].mxu0
    %v883 = vadd.f32 0.0, %v882
    %v884 = vpop.f32.mrb[0].mxu0
    %885 = vdwg.mxu0
    %v886 = vsel %vm152, %v883, -inf
    %887 = vmax.xlane.f32.xlu0 %v886
    %v888 = vpop.xlane.xlu0 %887
    %v889 = vsub.f32 %v883, %v888
    %v890 = vmul.f32 %v889, 1.442695
    %v891 = vpow.pop %v890
    %v892 = vsel %vm152, %v891, 0.0
    %893 = vadd.xlane.f32.xlu0 %v892
    %v894 = vpop.xlane.xlu0 %893
    %v895 = vrcp.pop %v894
    %v896 = vmul.f32 %v891, %v895
    %897 = vrot.lane.b32.xlu0 %v141, 48
    %v898 = vpop.permute.xlu0 %897
    %v901 = vsel %vm152, %v896, 0
    %903 = vmatprep.subr.mxu0 0.0
    %904 = vmatpush1.msra.mxu0 %v898
    %905 = vmatprep.subr.mxu0 0.0
    %906 = vmatpush1.msra.mxu0 0.0
    %907 = vmatprep.subr.mxu0 0.0
    %908 = vmatpush1.msra.mxu0 0.0
    %909 = vmatprep.subr.mxu0 0.0
    %910 = vmatpush1.msra.mxu0 0.0
    %911 = vmatprep.subr.mxu0 0.0
    %912 = vmatpush1.msra.mxu0 0.0
    %913 = vmatprep.subr.mxu0 0.0
    %914 = vmatpush1.msra.mxu0 0.0
    %915 = vmatprep.subr.mxu0 0.0
    %916 = vmatpush1.msra.mxu0 0.0
    %917 = vmatprep.subr.mxu0 0.0
    %918 = vmatpush1.msra.mxu0 0.0
    %919 = vmatprep.subr.mxu0 0.0
    %920 = vmatpush1.msra.mxu0 0.0
    %921 = vmatprep.subr.mxu0 0.0
    %922 = vmatpush1.msra.mxu0 0.0
    %923 = vmatprep.subr.mxu0 0.0
    %924 = vmatpush1.msra.mxu0 0.0
    %925 = vmatprep.subr.mxu0 0.0
    %926 = vmatpush1.msra.mxu0 0.0
    %927 = vmatprep.subr.mxu0 0.0
    %928 = vmatpush1.msra.mxu0 0.0
    %929 = vmatprep.subr.mxu0 0.0
    %930 = vmatpush1.msra.mxu0 0.0
    %931 = vmatprep.subr.mxu0 0.0
    %932 = vmatpush1.msra.mxu0 0.0
    %933 = vmatprep.subr.mxu0 0.0
    %934 = vmatpush1.msra.mxu0 0.0
    %935 = vmatprep.subr.mxu0 0.0
    %936 = vmatpush1.msra.mxu0 0.0
    %937 = vmatprep.subr.mxu0 0.0
    %938 = vmatpush1.msra.mxu0 0.0
    %939 = vmatprep.subr.mxu0 0.0
    %940 = vmatpush1.msra.mxu0 0.0
    %941 = vmatprep.subr.mxu0 0.0
    %942 = vmatpush1.msra.mxu0 0.0
    %943 = vmatprep.subr.mxu0 0.0
    %944 = vmatpush1.msra.mxu0 0.0
    %945 = vmatprep.subr.mxu0 0.0
    %946 = vmatpush1.msra.mxu0 0.0
    %947 = vmatprep.subr.mxu0 0.0
    %948 = vmatpush1.msra.mxu0 0.0
    %949 = vmatprep.subr.mxu0 0.0
    %950 = vmatpush1.msra.mxu0 0.0
    %951 = vmatprep.subr.mxu0 0.0
    %952 = vmatpush1.msra.mxu0 0.0
    %953 = vmatprep.subr.mxu0 0.0
    %954 = vmatpush1.msra.mxu0 0.0
    %955 = vmatprep.subr.mxu0 0.0
    %956 = vmatpush1.msra.mxu0 0.0
    %957 = vmatprep.subr.mxu0 0.0
    %958 = vmatpush1.msra.mxu0 0.0
    %959 = vmatprep.subr.mxu0 0.0
    %960 = vmatpush1.msra.mxu0 0.0
    %961 = vmatprep.subr.mxu0 0.0
    %962 = vmatpush1.msra.mxu0 0.0
    %963 = vmatprep.subr.mxu0 0.0
    %964 = vmatpush1.msra.mxu0 0.0
    %965 = vmatprep.subr.mxu0 0.0
    %966 = vmatpush1.msra.mxu0 0.0
    %967 = vmatprep.mubr.f32.mxu0 0.0
    %968 = vmatmul.mubr.f32.gmra.mrb[0].mxu0 %v901
    %v969 = vpop.f32.mrb[0].mxu0
    %v970 = vadd.f32 0.0, %v969
    %v971 = vpop.f32.mrb[0].mxu0
    %972 = vdwg.mxu0
    %973 = vrot.lane.b32.xlu0 %v146, 112
    %v974 = vpop.permute.xlu0 %973
    %975 = vrot.lane.b32.xlu0 %v146, 80
    %v976 = vpop.permute.xlu0 %975
    %v977 = vsel %vm152, %v974, 0
    %v979 = vsel %vm152, %v976, 0
    %981 = vmatprep.subr.mxu0 0.0
    %982 = vmatpush1.xpose.msra.mxu0 %v979
    %983 = vmatprep.subr.mxu0 0.0
    %984 = vmatpush1.xpose.msra.mxu0 0.0
    %985 = vmatprep.subr.mxu0 0.0
    %986 = vmatpush1.xpose.msra.mxu0 0.0
    %987 = vmatprep.subr.mxu0 0.0
    %988 = vmatpush1.xpose.msra.mxu0 0.0
    %989 = vmatprep.subr.mxu0 0.0
    %990 = vmatpush1.xpose.msra.mxu0 0.0
    %991 = vmatprep.subr.mxu0 0.0
    %992 = vmatpush1.xpose.msra.mxu0 0.0
    %993 = vmatprep.subr.mxu0 0.0
    %994 = vmatpush1.xpose.msra.mxu0 0.0
    %995 = vmatprep.subr.mxu0 0.0
    %996 = vmatpush1.xpose.msra.mxu0 0.0
    %997 = vmatprep.subr.mxu0 0.0
    %998 = vmatpush1.xpose.msra.mxu0 0.0
    %999 = vmatprep.subr.mxu0 0.0
    %1000 = vmatpush1.xpose.msra.mxu0 0.0
    %1001 = vmatprep.subr.mxu0 0.0
    %1002 = vmatpush1.xpose.msra.mxu0 0.0
    %1003 = vmatprep.subr.mxu0 0.0
    %1004 = vmatpush1.xpose.msra.mxu0 0.0
    %1005 = vmatprep.subr.mxu0 0.0
    %1006 = vmatpush1.xpose.msra.mxu0 0.0
    %1007 = vmatprep.subr.mxu0 0.0
    %1008 = vmatpush1.xpose.msra.mxu0 0.0
    %1009 = vmatprep.subr.mxu0 0.0
    %1010 = vmatpush1.xpose.msra.mxu0 0.0
    %1011 = vmatprep.subr.mxu0 0.0
    %1012 = vmatpush1.xpose.msra.mxu0 0.0
    %1013 = vmatprep.subr.mxu0 0.0
    %1014 = vmatpush1.xpose.msra.mxu0 0.0
    %1015 = vmatprep.subr.mxu0 0.0
    %1016 = vmatpush1.xpose.msra.mxu0 0.0
    %1017 = vmatprep.subr.mxu0 0.0
    %1018 = vmatpush1.xpose.msra.mxu0 0.0
    %1019 = vmatprep.subr.mxu0 0.0
    %1020 = vmatpush1.xpose.msra.mxu0 0.0
    %1021 = vmatprep.subr.mxu0 0.0
    %1022 = vmatpush1.xpose.msra.mxu0 0.0
    %1023 = vmatprep.subr.mxu0 0.0
    %1024 = vmatpush1.xpose.msra.mxu0 0.0
    %1025 = vmatprep.subr.mxu0 0.0
    %1026 = vmatpush1.xpose.msra.mxu0 0.0
    %1027 = vmatprep.subr.mxu0 0.0
    %1028 = vmatpush1.xpose.msra.mxu0 0.0
    %1029 = vmatprep.subr.mxu0 0.0
    %1030 = vmatpush1.xpose.msra.mxu0 0.0
    %1031 = vmatprep.subr.mxu0 0.0
    %1032 = vmatpush1.xpose.msra.mxu0 0.0
    %1033 = vmatprep.subr.mxu0 0.0
    %1034 = vmatpush1.xpose.msra.mxu0 0.0
    %1035 = vmatprep.subr.mxu0 0.0
    %1036 = vmatpush1.xpose.msra.mxu0 0.0
    %1037 = vmatprep.subr.mxu0 0.0
    %1038 = vmatpush1.xpose.msra.mxu0 0.0
    %1039 = vmatprep.subr.mxu0 0.0
    %1040 = vmatpush1.xpose.msra.mxu0 0.0
    %1041 = vmatprep.subr.mxu0 0.0
    %1042 = vmatpush1.xpose.msra.mxu0 0.0
    %1043 = vmatprep.subr.mxu0 0.0
    %1044 = vmatpush1.xpose.msra.mxu0 0.0
    %1045 = vmatprep.mubr.f32.mxu0 0.0
    %1046 = vmatmul.mubr.f32.gmra.mrb[0].mxu0 %v977
    %v1047 = vpop.f32.mrb[0].mxu0
    %v1048 = vadd.f32 0.0, %v1047
    %v1049 = vpop.f32.mrb[0].mxu0
    %1050 = vdwg.mxu0
    %v1051 = vsel %vm152, %v1048, -inf
    %1052 = vmax.xlane.f32.xlu0 %v1051
    %v1053 = vpop.xlane.xlu0 %1052
    %v1054 = vsub.f32 %v1048, %v1053
    %v1055 = vmul.f32 %v1054, 1.442695
    %v1056 = vpow.pop %v1055
    %v1057 = vsel %vm152, %v1056, 0.0
    %1058 = vadd.xlane.f32.xlu0 %v1057
    %v1059 = vpop.xlane.xlu0 %1058
    %v1060 = vrcp.pop %v1059
    %v1061 = vmul.f32 %v1056, %v1060
    %1062 = vrot.lane.b32.xlu0 %v146, 48
    %v1063 = vpop.permute.xlu0 %1062
    %v1066 = vsel %vm152, %v1061, 0
    %1068 = vmatprep.subr.mxu0 0.0
    %1069 = vmatpush1.msra.mxu0 %v1063
    %1070 = vmatprep.subr.mxu0 0.0
    %1071 = vmatpush1.msra.mxu0 0.0
    %1072 = vmatprep.subr.mxu0 0.0
    %1073 = vmatpush1.msra.mxu0 0.0
    %1074 = vmatprep.subr.mxu0 0.0
    %1075 = vmatpush1.msra.mxu0 0.0
    %1076 = vmatprep.subr.mxu0 0.0
    %1077 = vmatpush1.msra.mxu0 0.0
    %1078 = vmatprep.subr.mxu0 0.0
    %1079 = vmatpush1.msra.mxu0 0.0
    %1080 = vmatprep.subr.mxu0 0.0
    %1081 = vmatpush1.msra.mxu0 0.0
    %1082 = vmatprep.subr.mxu0 0.0
    %1083 = vmatpush1.msra.mxu0 0.0
    %1084 = vmatprep.subr.mxu0 0.0
    %1085 = vmatpush1.msra.mxu0 0.0
    %1086 = vmatprep.subr.mxu0 0.0
    %1087 = vmatpush1.msra.mxu0 0.0
    %1088 = vmatprep.subr.mxu0 0.0
    %1089 = vmatpush1.msra.mxu0 0.0
    %1090 = vmatprep.subr.mxu0 0.0
    %1091 = vmatpush1.msra.mxu0 0.0
    %1092 = vmatprep.subr.mxu0 0.0
    %1093 = vmatpush1.msra.mxu0 0.0
    %1094 = vmatprep.subr.mxu0 0.0
    %1095 = vmatpush1.msra.mxu0 0.0
    %1096 = vmatprep.subr.mxu0 0.0
    %1097 = vmatpush1.msra.mxu0 0.0
    %1098 = vmatprep.subr.mxu0 0.0
    %1099 = vmatpush1.msra.mxu0 0.0
    %1100 = vmatprep.subr.mxu0 0.0
    %1101 = vmatpush1.msra.mxu0 0.0
    %1102 = vmatprep.subr.mxu0 0.0
    %1103 = vmatpush1.msra.mxu0 0.0
    %1104 = vmatprep.subr.mxu0 0.0
    %1105 = vmatpush1.msra.mxu0 0.0
    %1106 = vmatprep.subr.mxu0 0.0
    %1107 = vmatpush1.msra.mxu0 0.0
    %1108 = vmatprep.subr.mxu0 0.0
    %1109 = vmatpush1.msra.mxu0 0.0
    %1110 = vmatprep.subr.mxu0 0.0
    %1111 = vmatpush1.msra.mxu0 0.0
    %1112 = vmatprep.subr.mxu0 0.0
    %1113 = vmatpush1.msra.mxu0 0.0
    %1114 = vmatprep.subr.mxu0 0.0
    %1115 = vmatpush1.msra.mxu0 0.0
    %1116 = vmatprep.subr.mxu0 0.0
    %1117 = vmatpush1.msra.mxu0 0.0
    %1118 = vmatprep.subr.mxu0 0.0
    %1119 = vmatpush1.msra.mxu0 0.0
    %1120 = vmatprep.subr.mxu0 0.0
    %1121 = vmatpush1.msra.mxu0 0.0
    %1122 = vmatprep.subr.mxu0 0.0
    %1123 = vmatpush1.msra.mxu0 0.0
    %1124 = vmatprep.subr.mxu0 0.0
    %1125 = vmatpush1.msra.mxu0 0.0
    %1126 = vmatprep.subr.mxu0 0.0
    %1127 = vmatpush1.msra.mxu0 0.0
    %1128 = vmatprep.subr.mxu0 0.0
    %1129 = vmatpush1.msra.mxu0 0.0
    %1130 = vmatprep.subr.mxu0 0.0
    %1131 = vmatpush1.msra.mxu0 0.0
    %1132 = vmatprep.mubr.f32.mxu0 0.0
    %1133 = vmatmul.mubr.f32.gmra.mrb[0].mxu0 %v1066
    %v1134 = vpop.f32.mrb[0].mxu0
    %v1135 = vadd.f32 0.0, %v1134
    %v1136 = vpop.f32.mrb[0].mxu0
    %1137 = vdwg.mxu0
    %1138 = vrot.lane.b32.xlu0 %v141, 104
    %v1139 = vpop.permute.xlu0 %1138
    %1140 = vrot.lane.b32.xlu0 %v141, 72
    %v1141 = vpop.permute.xlu0 %1140
    %v1142 = vsel %vm152, %v1139, 0
    %v1144 = vsel %vm152, %v1141, 0
    %1146 = vmatprep.subr.mxu0 0.0
    %1147 = vmatpush1.xpose.msra.mxu0 %v1144
    %1148 = vmatprep.subr.mxu0 0.0
    %1149 = vmatpush1.xpose.msra.mxu0 0.0
    %1150 = vmatprep.subr.mxu0 0.0
    %1151 = vmatpush1.xpose.msra.mxu0 0.0
    %1152 = vmatprep.subr.mxu0 0.0
    %1153 = vmatpush1.xpose.msra.mxu0 0.0
    %1154 = vmatprep.subr.mxu0 0.0
    %1155 = vmatpush1.xpose.msra.mxu0 0.0
    %1156 = vmatprep.subr.mxu0 0.0
    %1157 = vmatpush1.xpose.msra.mxu0 0.0
    %1158 = vmatprep.subr.mxu0 0.0
    %1159 = vmatpush1.xpose.msra.mxu0 0.0
    %1160 = vmatprep.subr.mxu0 0.0
    %1161 = vmatpush1.xpose.msra.mxu0 0.0
    %1162 = vmatprep.subr.mxu0 0.0
    %1163 = vmatpush1.xpose.msra.mxu0 0.0
    %1164 = vmatprep.subr.mxu0 0.0
    %1165 = vmatpush1.xpose.msra.mxu0 0.0
    %1166 = vmatprep.subr.mxu0 0.0
    %1167 = vmatpush1.xpose.msra.mxu0 0.0
    %1168 = vmatprep.subr.mxu0 0.0
    %1169 = vmatpush1.xpose.msra.mxu0 0.0
    %1170 = vmatprep.subr.mxu0 0.0
    %1171 = vmatpush1.xpose.msra.mxu0 0.0
    %1172 = vmatprep.subr.mxu0 0.0
    %1173 = vmatpush1.xpose.msra.mxu0 0.0
    %1174 = vmatprep.subr.mxu0 0.0
    %1175 = vmatpush1.xpose.msra.mxu0 0.0
    %1176 = vmatprep.subr.mxu0 0.0
    %1177 = vmatpush1.xpose.msra.mxu0 0.0
    %1178 = vmatprep.subr.mxu0 0.0
    %1179 = vmatpush1.xpose.msra.mxu0 0.0
    %1180 = vmatprep.subr.mxu0 0.0
    %1181 = vmatpush1.xpose.msra.mxu0 0.0
    %1182 = vmatprep.subr.mxu0 0.0
    %1183 = vmatpush1.xpose.msra.mxu0 0.0
    %1184 = vmatprep.subr.mxu0 0.0
    %1185 = vmatpush1.xpose.msra.mxu0 0.0
    %1186 = vmatprep.subr.mxu0 0.0
    %1187 = vmatpush1.xpose.msra.mxu0 0.0
    %1188 = vmatprep.subr.mxu0 0.0
    %1189 = vmatpush1.xpose.msra.mxu0 0.0
    %1190 = vmatprep.subr.mxu0 0.0
    %1191 = vmatpush1.xpose.msra.mxu0 0.0
    %1192 = vmatprep.subr.mxu0 0.0
    %1193 = vmatpush1.xpose.msra.mxu0 0.0
    %1194 = vmatprep.subr.mxu0 0.0
    %1195 = vmatpush1.xpose.msra.mxu0 0.0
    %1196 = vmatprep.subr.mxu0 0.0
    %1197 = vmatpush1.xpose.msra.mxu0 0.0
    %1198 = vmatprep.subr.mxu0 0.0
    %1199 = vmatpush1.xpose.msra.mxu0 0.0
    %1200 = vmatprep.subr.mxu0 0.0
    %1201 = vmatpush1.xpose.msra.mxu0 0.0
    %1202 = vmatprep.subr.mxu0 0.0
    %1203 = vmatpush1.xpose.msra.mxu0 0.0
    %1204 = vmatprep.subr.mxu0 0.0
    %1205 = vmatpush1.xpose.msra.mxu0 0.0
    %1206 = vmatprep.subr.mxu0 0.0
    %1207 = vmatpush1.xpose.msra.mxu0 0.0
    %1208 = vmatprep.subr.mxu0 0.0
    %1209 = vmatpush1.xpose.msra.mxu0 0.0
    %1210 = vmatprep.mubr.f32.mxu0 0.0
    %1211 = vmatmul.mubr.f32.gmra.mrb[0].mxu0 %v1142
    %v1212 = vpop.f32.mrb[0].mxu0
    %v1213 = vadd.f32 0.0, %v1212
    %v1214 = vpop.f32.mrb[0].mxu0
    %1215 = vdwg.mxu0
    %v1216 = vsel %vm152, %v1213, -inf
    %1217 = vmax.xlane.f32.xlu0 %v1216
    %v1218 = vpop.xlane.xlu0 %1217
    %v1219 = vsub.f32 %v1213, %v1218
    %v1220 = vmul.f32 %v1219, 1.442695
    %v1221 = vpow.pop %v1220
    %v1222 = vsel %vm152, %v1221, 0.0
    %1223 = vadd.xlane.f32.xlu0 %v1222
    %v1224 = vpop.xlane.xlu0 %1223
    %v1225 = vrcp.pop %v1224
    %v1226 = vmul.f32 %v1221, %v1225
    %1227 = vrot.lane.b32.xlu0 %v141, 40
    %v1228 = vpop.permute.xlu0 %1227
    %v1231 = vsel %vm152, %v1226, 0
    %1233 = vmatprep.subr.mxu0 0.0
    %1234 = vmatpush1.msra.mxu0 %v1228
    %1235 = vmatprep.subr.mxu0 0.0
    %1236 = vmatpush1.msra.mxu0 0.0
    %1237 = vmatprep.subr.mxu0 0.0
    %1238 = vmatpush1.msra.mxu0 0.0
    %1239 = vmatprep.subr.mxu0 0.0
    %1240 = vmatpush1.msra.mxu0 0.0
    %1241 = vmatprep.subr.mxu0 0.0
    %1242 = vmatpush1.msra.mxu0 0.0
    %1243 = vmatprep.subr.mxu0 0.0
    %1244 = vmatpush1.msra.mxu0 0.0
    %1245 = vmatprep.subr.mxu0 0.0
    %1246 = vmatpush1.msra.mxu0 0.0
    %1247 = vmatprep.subr.mxu0 0.0
    %1248 = vmatpush1.msra.mxu0 0.0
    %1249 = vmatprep.subr.mxu0 0.0
    %1250 = vmatpush1.msra.mxu0 0.0
    %1251 = vmatprep.subr.mxu0 0.0
    %1252 = vmatpush1.msra.mxu0 0.0
    %1253 = vmatprep.subr.mxu0 0.0
    %1254 = vmatpush1.msra.mxu0 0.0
    %1255 = vmatprep.subr.mxu0 0.0
    %1256 = vmatpush1.msra.mxu0 0.0
    %1257 = vmatprep.subr.mxu0 0.0
    %1258 = vmatpush1.msra.mxu0 0.0
    %1259 = vmatprep.subr.mxu0 0.0
    %1260 = vmatpush1.msra.mxu0 0.0
    %1261 = vmatprep.subr.mxu0 0.0
    %1262 = vmatpush1.msra.mxu0 0.0
    %1263 = vmatprep.subr.mxu0 0.0
    %1264 = vmatpush1.msra.mxu0 0.0
    %1265 = vmatprep.subr.mxu0 0.0
    %1266 = vmatpush1.msra.mxu0 0.0
    %1267 = vmatprep.subr.mxu0 0.0
    %1268 = vmatpush1.msra.mxu0 0.0
    %1269 = vmatprep.subr.mxu0 0.0
    %1270 = vmatpush1.msra.mxu0 0.0
    %1271 = vmatprep.subr.mxu0 0.0
    %1272 = vmatpush1.msra.mxu0 0.0
    %1273 = vmatprep.subr.mxu0 0.0
    %1274 = vmatpush1.msra.mxu0 0.0
    %1275 = vmatprep.subr.mxu0 0.0
    %1276 = vmatpush1.msra.mxu0 0.0
    %1277 = vmatprep.subr.mxu0 0.0
    %1278 = vmatpush1.msra.mxu0 0.0
    %1279 = vmatprep.subr.mxu0 0.0
    %1280 = vmatpush1.msra.mxu0 0.0
    %1281 = vmatprep.subr.mxu0 0.0
    %1282 = vmatpush1.msra.mxu0 0.0
    %1283 = vmatprep.subr.mxu0 0.0
    %1284 = vmatpush1.msra.mxu0 0.0
    %1285 = vmatprep.subr.mxu0 0.0
    %1286 = vmatpush1.msra.mxu0 0.0
    %1287 = vmatprep.subr.mxu0 0.0
    %1288 = vmatpush1.msra.mxu0 0.0
    %1289 = vmatprep.subr.mxu0 0.0
    %1290 = vmatpush1.msra.mxu0 0.0
    %1291 = vmatprep.subr.mxu0 0.0
    %1292 = vmatpush1.msra.mxu0 0.0
    %1293 = vmatprep.subr.mxu0 0.0
    %1294 = vmatpush1.msra.mxu0 0.0
    %1295 = vmatprep.subr.mxu0 0.0
    %1296 = vmatpush1.msra.mxu0 0.0
    %1297 = vmatprep.mubr.f32.mxu0 0.0
    %1298 = vmatmul.mubr.f32.gmra.mrb[0].mxu0 %v1231
    %v1299 = vpop.f32.mrb[0].mxu0
    %v1300 = vadd.f32 0.0, %v1299
    %v1301 = vpop.f32.mrb[0].mxu0
    %1302 = vdwg.mxu0
    %1303 = vrot.lane.b32.xlu0 %v146, 104
    %v1304 = vpop.permute.xlu0 %1303
    %1305 = vrot.lane.b32.xlu0 %v146, 72
    %v1306 = vpop.permute.xlu0 %1305
    %v1307 = vsel %vm152, %v1304, 0
    %v1309 = vsel %vm152, %v1306, 0
    %1311 = vmatprep.subr.mxu0 0.0
    %1312 = vmatpush1.xpose.msra.mxu0 %v1309
    %1313 = vmatprep.subr.mxu0 0.0
    %1314 = vmatpush1.xpose.msra.mxu0 0.0
    %1315 = vmatprep.subr.mxu0 0.0
    %1316 = vmatpush1.xpose.msra.mxu0 0.0
    %1317 = vmatprep.subr.mxu0 0.0
    %1318 = vmatpush1.xpose.msra.mxu0 0.0
    %1319 = vmatprep.subr.mxu0 0.0
    %1320 = vmatpush1.xpose.msra.mxu0 0.0
    %1321 = vmatprep.subr.mxu0 0.0
    %1322 = vmatpush1.xpose.msra.mxu0 0.0
    %1323 = vmatprep.subr.mxu0 0.0
    %1324 = vmatpush1.xpose.msra.mxu0 0.0
    %1325 = vmatprep.subr.mxu0 0.0
    %1326 = vmatpush1.xpose.msra.mxu0 0.0
    %1327 = vmatprep.subr.mxu0 0.0
    %1328 = vmatpush1.xpose.msra.mxu0 0.0
    %1329 = vmatprep.subr.mxu0 0.0
    %1330 = vmatpush1.xpose.msra.mxu0 0.0
    %1331 = vmatprep.subr.mxu0 0.0
    %1332 = vmatpush1.xpose.msra.mxu0 0.0
    %1333 = vmatprep.subr.mxu0 0.0
    %1334 = vmatpush1.xpose.msra.mxu0 0.0
    %1335 = vmatprep.subr.mxu0 0.0
    %1336 = vmatpush1.xpose.msra.mxu0 0.0
    %1337 = vmatprep.subr.mxu0 0.0
    %1338 = vmatpush1.xpose.msra.mxu0 0.0
    %1339 = vmatprep.subr.mxu0 0.0
    %1340 = vmatpush1.xpose.msra.mxu0 0.0
    %1341 = vmatprep.subr.mxu0 0.0
    %1342 = vmatpush1.xpose.msra.mxu0 0.0
    %1343 = vmatprep.subr.mxu0 0.0
    %1344 = vmatpush1.xpose.msra.mxu0 0.0
    %1345 = vmatprep.subr.mxu0 0.0
    %1346 = vmatpush1.xpose.msra.mxu0 0.0
    %1347 = vmatprep.subr.mxu0 0.0
    %1348 = vmatpush1.xpose.msra.mxu0 0.0
    %1349 = vmatprep.subr.mxu0 0.0
    %1350 = vmatpush1.xpose.msra.mxu0 0.0
    %1351 = vmatprep.subr.mxu0 0.0
    %1352 = vmatpush1.xpose.msra.mxu0 0.0
    %1353 = vmatprep.subr.mxu0 0.0
    %1354 = vmatpush1.xpose.msra.mxu0 0.0
    %1355 = vmatprep.subr.mxu0 0.0
    %1356 = vmatpush1.xpose.msra.mxu0 0.0
    %1357 = vmatprep.subr.mxu0 0.0
    %1358 = vmatpush1.xpose.msra.mxu0 0.0
    %1359 = vmatprep.subr.mxu0 0.0
    %1360 = vmatpush1.xpose.msra.mxu0 0.0
    %1361 = vmatprep.subr.mxu0 0.0
    %1362 = vmatpush1.xpose.msra.mxu0 0.0
    %1363 = vmatprep.subr.mxu0 0.0
    %1364 = vmatpush1.xpose.msra.mxu0 0.0
    %1365 = vmatprep.subr.mxu0 0.0
    %1366 = vmatpush1.xpose.msra.mxu0 0.0
    %1367 = vmatprep.subr.mxu0 0.0
    %1368 = vmatpush1.xpose.msra.mxu0 0.0
    %1369 = vmatprep.subr.mxu0 0.0
    %1370 = vmatpush1.xpose.msra.mxu0 0.0
    %1371 = vmatprep.subr.mxu0 0.0
    %1372 = vmatpush1.xpose.msra.mxu0 0.0
    %1373 = vmatprep.subr.mxu0 0.0
    %1374 = vmatpush1.xpose.msra.mxu0 0.0
    %1375 = vmatprep.mubr.f32.mxu0 0.0
    %1376 = vmatmul.mubr.f32.gmra.mrb[0].mxu0 %v1307
    %v1377 = vpop.f32.mrb[0].mxu0
    %v1378 = vadd.f32 0.0, %v1377
    %v1379 = vpop.f32.mrb[0].mxu0
    %1380 = vdwg.mxu0
    %v1381 = vsel %vm152, %v1378, -inf
    %1382 = vmax.xlane.f32.xlu0 %v1381
    %v1383 = vpop.xlane.xlu0 %1382
    %v1384 = vsub.f32 %v1378, %v1383
    %v1385 = vmul.f32 %v1384, 1.442695
    %v1386 = vpow.pop %v1385
    %v1387 = vsel %vm152, %v1386, 0.0
    %1388 = vadd.xlane.f32.xlu0 %v1387
    %v1389 = vpop.xlane.xlu0 %1388
    %v1390 = vrcp.pop %v1389
    %v1391 = vmul.f32 %v1386, %v1390
    %1392 = vrot.lane.b32.xlu0 %v146, 40
    %v1393 = vpop.permute.xlu0 %1392
    %v1396 = vsel %vm152, %v1391, 0
    %1398 = vmatprep.subr.mxu0 0.0
    %1399 = vmatpush1.msra.mxu0 %v1393
    %1400 = vmatprep.subr.mxu0 0.0
    %1401 = vmatpush1.msra.mxu0 0.0
    %1402 = vmatprep.subr.mxu0 0.0
    %1403 = vmatpush1.msra.mxu0 0.0
    %1404 = vmatprep.subr.mxu0 0.0
    %1405 = vmatpush1.msra.mxu0 0.0
    %1406 = vmatprep.subr.mxu0 0.0
    %1407 = vmatpush1.msra.mxu0 0.0
    %1408 = vmatprep.subr.mxu0 0.0
    %1409 = vmatpush1.msra.mxu0 0.0
    %1410 = vmatprep.subr.mxu0 0.0
    %1411 = vmatpush1.msra.mxu0 0.0
    %1412 = vmatprep.subr.mxu0 0.0
    %1413 = vmatpush1.msra.mxu0 0.0
    %1414 = vmatprep.subr.mxu0 0.0
    %1415 = vmatpush1.msra.mxu0 0.0
    %1416 = vmatprep.subr.mxu0 0.0
    %1417 = vmatpush1.msra.mxu0 0.0
    %1418 = vmatprep.subr.mxu0 0.0
    %1419 = vmatpush1.msra.mxu0 0.0
    %1420 = vmatprep.subr.mxu0 0.0
    %1421 = vmatpush1.msra.mxu0 0.0
    %1422 = vmatprep.subr.mxu0 0.0
    %1423 = vmatpush1.msra.mxu0 0.0
    %1424 = vmatprep.subr.mxu0 0.0
    %1425 = vmatpush1.msra.mxu0 0.0
    %1426 = vmatprep.subr.mxu0 0.0
    %1427 = vmatpush1.msra.mxu0 0.0
    %1428 = vmatprep.subr.mxu0 0.0
    %1429 = vmatpush1.msra.mxu0 0.0
    %1430 = vmatprep.subr.mxu0 0.0
    %1431 = vmatpush1.msra.mxu0 0.0
    %1432 = vmatprep.subr.mxu0 0.0
    %1433 = vmatpush1.msra.mxu0 0.0
    %1434 = vmatprep.subr.mxu0 0.0
    %1435 = vmatpush1.msra.mxu0 0.0
    %1436 = vmatprep.subr.mxu0 0.0
    %1437 = vmatpush1.msra.mxu0 0.0
    %1438 = vmatprep.subr.mxu0 0.0
    %1439 = vmatpush1.msra.mxu0 0.0
    %1440 = vmatprep.subr.mxu0 0.0
    %1441 = vmatpush1.msra.mxu0 0.0
    %1442 = vmatprep.subr.mxu0 0.0
    %1443 = vmatpush1.msra.mxu0 0.0
    %1444 = vmatprep.subr.mxu0 0.0
    %1445 = vmatpush1.msra.mxu0 0.0
    %1446 = vmatprep.subr.mxu0 0.0
    %1447 = vmatpush1.msra.mxu0 0.0
    %1448 = vmatprep.subr.mxu0 0.0
    %1449 = vmatpush1.msra.mxu0 0.0
    %1450 = vmatprep.subr.mxu0 0.0
    %1451 = vmatpush1.msra.mxu0 0.0
    %1452 = vmatprep.subr.mxu0 0.0
    %1453 = vmatpush1.msra.mxu0 0.0
    %1454 = vmatprep.subr.mxu0 0.0
    %1455 = vmatpush1.msra.mxu0 0.0
    %1456 = vmatprep.subr.mxu0 0.0
    %1457 = vmatpush1.msra.mxu0 0.0
    %1458 = vmatprep.subr.mxu0 0.0
    %1459 = vmatpush1.msra.mxu0 0.0
    %1460 = vmatprep.subr.mxu0 0.0
    %1461 = vmatpush1.msra.mxu0 0.0
    %1462 = vmatprep.mubr.f32.mxu0 0.0
    %1463 = vmatmul.mubr.f32.gmra.mrb[0].mxu0 %v1396
    %v1464 = vpop.f32.mrb[0].mxu0
    %v1465 = vadd.f32 0.0, %v1464
    %v1466 = vpop.f32.mrb[0].mxu0
    %1467 = vdwg.mxu0
    %1470 = vrot.lane.b32.xlu0 %v640, 8
    %v1471 = vpop.permute.xlu0 %1470
    %1472 = vrot.lane.b32.xlu0 %v805, 8
    %v1473 = vpop.permute.xlu0 %1472
    %1478 = vrot.lane.b32.xlu0 %v970, 16
    %v1479 = vpop.permute.xlu0 %1478
    %1480 = vrot.lane.b32.xlu0 %v1135, 16
    %v1481 = vpop.permute.xlu0 %1480
    %1486 = vrot.lane.b32.xlu0 %v1300, 24
    %v1487 = vpop.permute.xlu0 %1486
    %1488 = vrot.lane.b32.xlu0 %v1465, 24
    %v1489 = vpop.permute.xlu0 %1488
    %v1492 = vsel %vm152, %v311, %v1471
    %v1493 = vsel %vm152, %v475, %v1473
    %vm1494 = vcmask 130048
    %v1495 = vsel %vm1494, %v1492, %v1479
    %v1496 = vsel %vm1494, %v1493, %v1481
    %vm1497 = vcmask 195584
    %v1498 = vsel %vm1497, %v1495, %v1487
    %v1499 = vsel %vm1497, %v1496, %v1489
    %v1500 = vlaneseq
    %v1501 = vshrl.u32 %v1500, 7
    %v1502 = vsub.s32 2, %v1501
    %v1503 = vrot.slane %v62, %v1502
    %v1505 = vsel %vm67, %v1498, 0
    %v1508 = vsel %vm67, %v1499, 0
    %1510 = vmatprep.subr.mxu0 0.0
    %1511 = vmatpush1.msra.mxu0 %v46
    %1512 = vmatprep.subr.mxu0 0.0
    %1513 = vmatpush1.msra.mxu0 %v47
    %1514 = vmatprep.subr.mxu0 0.0
    %1515 = vmatpush1.msra.mxu0 %v48
    %1516 = vmatprep.subr.mxu0 0.0
    %1517 = vmatpush1.msra.mxu0 %v49
    %1518 = vmatprep.subr.mxu0 0.0
    %1519 = vmatpush1.msra.mxu0 0.0
    %1520 = vmatprep.subr.mxu0 0.0
    %1521 = vmatpush1.msra.mxu0 0.0
    %1522 = vmatprep.subr.mxu0 0.0
    %1523 = vmatpush1.msra.mxu0 0.0
    %1524 = vmatprep.subr.mxu0 0.0
    %1525 = vmatpush1.msra.mxu0 0.0
    %1526 = vmatprep.subr.mxu0 0.0
    %1527 = vmatpush1.msra.mxu0 0.0
    %1528 = vmatprep.subr.mxu0 0.0
    %1529 = vmatpush1.msra.mxu0 0.0
    %1530 = vmatprep.subr.mxu0 0.0
    %1531 = vmatpush1.msra.mxu0 0.0
    %1532 = vmatprep.subr.mxu0 0.0
    %1533 = vmatpush1.msra.mxu0 0.0
    %1534 = vmatprep.subr.mxu0 0.0
    %1535 = vmatpush1.msra.mxu0 0.0
    %1536 = vmatprep.subr.mxu0 0.0
    %1537 = vmatpush1.msra.mxu0 0.0
    %1538 = vmatprep.subr.mxu0 0.0
    %1539 = vmatpush1.msra.mxu0 0.0
    %1540 = vmatprep.subr.mxu0 0.0
    %1541 = vmatpush1.msra.mxu0 0.0
    %1542 = vmatprep.subr.mxu0 0.0
    %1543 = vmatpush1.msra.mxu0 0.0
    %1544 = vmatprep.subr.mxu0 0.0
    %1545 = vmatpush1.msra.mxu0 0.0
    %1546 = vmatprep.subr.mxu0 0.0
    %1547 = vmatpush1.msra.mxu0 0.0
    %1548 = vmatprep.subr.mxu0 0.0
    %1549 = vmatpush1.msra.mxu0 0.0
    %1550 = vmatprep.subr.mxu0 0.0
    %1551 = vmatpush1.msra.mxu0 0.0
    %1552 = vmatprep.subr.mxu0 0.0
    %1553 = vmatpush1.msra.mxu0 0.0
    %1554 = vmatprep.subr.mxu0 0.0
    %1555 = vmatpush1.msra.mxu0 0.0
    %1556 = vmatprep.subr.mxu0 0.0
    %1557 = vmatpush1.msra.mxu0 0.0
    %1558 = vmatprep.subr.mxu0 0.0
    %1559 = vmatpush1.msra.mxu0 0.0
    %1560 = vmatprep.subr.mxu0 0.0
    %1561 = vmatpush1.msra.mxu0 0.0
    %1562 = vmatprep.subr.mxu0 0.0
    %1563 = vmatpush1.msra.mxu0 0.0
    %1564 = vmatprep.subr.mxu0 0.0
    %1565 = vmatpush1.msra.mxu0 0.0
    %1566 = vmatprep.subr.mxu0 0.0
    %1567 = vmatpush1.msra.mxu0 0.0
    %1568 = vmatprep.subr.mxu0 0.0
    %1569 = vmatpush1.msra.mxu0 0.0
    %1570 = vmatprep.subr.mxu0 0.0
    %1571 = vmatpush1.msra.mxu0 0.0
    %1572 = vmatprep.subr.mxu0 0.0
    %1573 = vmatpush1.msra.mxu0 0.0
    %1574 = vmatprep.mubr.f32.mxu0 0.0
    %1575 = vmatmul.mubr.f32.gmra.mrb[0].mxu0 %v1505
    %v1576 = vpop.f32.mrb[0].mxu0
    %v1577 = vadd.f32 %v1503, %v1576
    %v1578 = vpop.f32.mrb[0].mxu0
    %1579 = vmatprep.mubr.f32.mxu0 0.0
    %1580 = vmatmul.mubr.f32.gmra.mrb[0].mxu0 %v1508
    %v1581 = vpop.f32.mrb[0].mxu0
    %v1582 = vadd.f32 %v1503, %v1581
    %v1583 = vpop.f32.mrb[0].mxu0
    %1584 = vdwg.mxu0
    %v1585 = vadd.f32 %v40, %v1577
    %v1586 = vadd.f32 %v41, %v1582
    %v1587 = vsel %vm67, %v1585, 0.0
    %1588 = vadd.xlane.f32.xlu0 %v1587
    %v1589 = vpop.xlane.xlu0 %1588
    %v1590 = vsel %vm67, %v1586, 0.0
    %1591 = vadd.xlane.f32.xlu0 %v1590
    %v1592 = vpop.xlane.xlu0 %1591
    %v1593 = vrcp.pop 32.0
    %v1594 = vmul.f32 %v1589, %v1593
    %v1595 = vmul.f32 %v1592, %v1593
    %v1596 = vmul.f32 %v1585, %v1585
    %v1597 = vmul.f32 %v1586, %v1586
    %v1598 = vsel %vm67, %v1596, 0.0
    %1599 = vadd.xlane.f32.xlu0 %v1598
    %v1600 = vpop.xlane.xlu0 %1599
    %v1601 = vsel %vm67, %v1597, 0.0
    %1602 = vadd.xlane.f32.xlu0 %v1601
    %v1603 = vpop.xlane.xlu0 %1602
    %v1604 = vmul.f32 %v1600, %v1593
    %v1605 = vmul.f32 %v1603, %v1593
    %v1606 = vmul.f32 %v1594, %v1594
    %v1607 = vmul.f32 %v1595, %v1595
    %v1608 = vsub.f32 %v1604, %v1606
    %v1609 = vsub.f32 %v1605, %v1607
    %v1610 = vsub.f32 %v1585, %v1594
    %v1611 = vsub.f32 %v1586, %v1595
    %v1612 = vadd.f32 %v1608, 1e-05
    %v1613 = vadd.f32 %v1609, 1e-05
    %v1614 = vrsqrt.pop %v1612
    %v1615 = vrsqrt.pop %v1613
    %v1616 = vmul.f32 %v1610, %v1614
    %v1617 = vmul.f32 %v1611, %v1615
    %v1618 = vlaneseq
    %v1619 = vshrl.u32 %v1618, 7
    %v1620 = vsub.s32 4, %v1619
    %v1621 = vrot.slane %v62, %v1620
    %v1622 = vmul.f32 %v1616, %v1621
    %v1623 = vmul.f32 %v1617, %v1621
    %v1624 = vlaneseq
    %v1625 = vshrl.u32 %v1624, 7
    %v1626 = vsub.s32 5, %v1625
    %v1627 = vrot.slane %v62, %v1626
    %v1628 = vadd.f32 %v1622, %v1627
    %v1629 = vadd.f32 %v1623, %v1627
    %v1630 = vlaneseq
    %v1631 = vshrl.u32 %v1630, 7
    %v1632 = vsub.s32 1, %v1631
    %v1633 = vrot.slane %v62, %v1632
    %v1635 = vsel %vm67, %v1628, 0
    %v1638 = vsel %vm67, %v1629, 0
    %1640 = vmatprep.subr.mxu0 0.0
    %1641 = vmatpush1.msra.mxu0 %v50
    %1642 = vmatprep.subr.mxu0 0.0
    %1643 = vmatpush1.msra.mxu0 %v51
    %1644 = vmatprep.subr.mxu0 0.0
    %1645 = vmatpush1.msra.mxu0 %v52
    %1646 = vmatprep.subr.mxu0 0.0
    %1647 = vmatpush1.msra.mxu0 %v53
    %1648 = vmatprep.subr.mxu0 0.0
    %1649 = vmatpush1.msra.mxu0 0.0
    %1650 = vmatprep.subr.mxu0 0.0
    %1651 = vmatpush1.msra.mxu0 0.0
    %1652 = vmatprep.subr.mxu0 0.0
    %1653 = vmatpush1.msra.mxu0 0.0
    %1654 = vmatprep.subr.mxu0 0.0
    %1655 = vmatpush1.msra.mxu0 0.0
    %1656 = vmatprep.subr.mxu0 0.0
    %1657 = vmatpush1.msra.mxu0 0.0
    %1658 = vmatprep.subr.mxu0 0.0
    %1659 = vmatpush1.msra.mxu0 0.0
    %1660 = vmatprep.subr.mxu0 0.0
    %1661 = vmatpush1.msra.mxu0 0.0
    %1662 = vmatprep.subr.mxu0 0.0
    %1663 = vmatpush1.msra.mxu0 0.0
    %1664 = vmatprep.subr.mxu0 0.0
    %1665 = vmatpush1.msra.mxu0 0.0
    %1666 = vmatprep.subr.mxu0 0.0
    %1667 = vmatpush1.msra.mxu0 0.0
    %1668 = vmatprep.subr.mxu0 0.0
    %1669 = vmatpush1.msra.mxu0 0.0
    %1670 = vmatprep.subr.mxu0 0.0
    %1671 = vmatpush1.msra.mxu0 0.0
    %1672 = vmatprep.subr.mxu0 0.0
    %1673 = vmatpush1.msra.mxu0 0.0
    %1674 = vmatprep.subr.mxu0 0.0
    %1675 = vmatpush1.msra.mxu0 0.0
    %1676 = vmatprep.subr.mxu0 0.0
    %1677 = vmatpush1.msra.mxu0 0.0
    %1678 = vmatprep.subr.mxu0 0.0
    %1679 = vmatpush1.msra.mxu0 0.0
    %1680 = vmatprep.subr.mxu0 0.0
    %1681 = vmatpush1.msra.mxu0 0.0
    %1682 = vmatprep.subr.mxu0 0.0
    %1683 = vmatpush1.msra.mxu0 0.0
    %1684 = vmatprep.subr.mxu0 0.0
    %1685 = vmatpush1.msra.mxu0 0.0
    %1686 = vmatprep.subr.mxu0 0.0
    %1687 = vmatpush1.msra.mxu0 0.0
    %1688 = vmatprep.subr.mxu0 0.0
    %1689 = vmatpush1.msra.mxu0 0.0
    %1690 = vmatprep.subr.mxu0 0.0
    %1691 = vmatpush1.msra.mxu0 0.0
    %1692 = vmatprep.subr.mxu0 0.0
    %1693 = vmatpush1.msra.mxu0 0.0
    %1694 = vmatprep.subr.mxu0 0.0
    %1695 = vmatpush1.msra.mxu0 0.0
    %1696 = vmatprep.subr.mxu0 0.0
    %1697 = vmatpush1.msra.mxu0 0.0
    %1698 = vmatprep.subr.mxu0 0.0
    %1699 = vmatpush1.msra.mxu0 0.0
    %1700 = vmatprep.subr.mxu0 0.0
    %1701 = vmatpush1.msra.mxu0 0.0
    %1702 = vmatprep.subr.mxu0 0.0
    %1703 = vmatpush1.msra.mxu0 0.0
    %1704 = vmatprep.mubr.f32.mxu0 0.0
    %1705 = vmatmul.mubr.f32.gmra.mrb[0].mxu0 %v1635
    %v1706 = vpop.f32.mrb[0].mxu0
    %v1707 = vadd.f32 %v1633, %v1706
    %v1708 = vpop.f32.mrb[0].mxu0
    %1709 = vmatprep.mubr.f32.mxu0 0.0
    %1710 = vmatmul.mubr.f32.gmra.mrb[0].mxu0 %v1638
    %v1711 = vpop.f32.mrb[0].mxu0
    %v1712 = vadd.f32 %v1633, %v1711
    %v1713 = vpop.f32.mrb[0].mxu0
    %1714 = vdwg.mxu0
    %v1715 = vmax.f32 %v1707, 0.0
    %v1716 = vmax.f32 %v1712, 0.0
    %v1717 = vlaneseq
    %v1718 = vshrl.u32 %v1717, 7
    %v1719 = vsub.s32 3, %v1718
    %v1720 = vrot.slane %v62, %v1719
    %vm1721 = vcmask 523264
    %v1723 = vsel %vm1721, %v1715, 0
    %v1726 = vsel %vm1721, %v1716, 0
    %1728 = vmatprep.subr.mxu0 0.0
    %1729 = vmatpush1.msra.mxu0 %v54
    %1730 = vmatprep.subr.mxu0 0.0
    %1731 = vmatpush1.msra.mxu0 %v55
    %1732 = vmatprep.subr.mxu0 0.0
    %1733 = vmatpush1.msra.mxu0 %v56
    %1734 = vmatprep.subr.mxu0 0.0
    %1735 = vmatpush1.msra.mxu0 %v57
    %1736 = vmatprep.subr.mxu0 0.0
    %1737 = vmatpush1.msra.mxu0 %v58
    %1738 = vmatprep.subr.mxu0 0.0
    %1739 = vmatpush1.msra.mxu0 %v59
    %1740 = vmatprep.subr.mxu0 0.0
    %1741 = vmatpush1.msra.mxu0 %v60
    %1742 = vmatprep.subr.mxu0 0.0
    %1743 = vmatpush1.msra.mxu0 %v61
    %1744 = vmatprep.subr.mxu0 0.0
    %1745 = vmatpush1.msra.mxu0 0.0
    %1746 = vmatprep.subr.mxu0 0.0
    %1747 = vmatpush1.msra.mxu0 0.0
    %1748 = vmatprep.subr.mxu0 0.0
    %1749 = vmatpush1.msra.mxu0 0.0
    %1750 = vmatprep.subr.mxu0 0.0
    %1751 = vmatpush1.msra.mxu0 0.0
    %1752 = vmatprep.subr.mxu0 0.0
    %1753 = vmatpush1.msra.mxu0 0.0
    %1754 = vmatprep.subr.mxu0 0.0
    %1755 = vmatpush1.msra.mxu0 0.0
    %1756 = vmatprep.subr.mxu0 0.0
    %1757 = vmatpush1.msra.mxu0 0.0
    %1758 = vmatprep.subr.mxu0 0.0
    %1759 = vmatpush1.msra.mxu0 0.0
    %1760 = vmatprep.subr.mxu0 0.0
    %1761 = vmatpush1.msra.mxu0 0.0
    %1762 = vmatprep.subr.mxu0 0.0
    %1763 = vmatpush1.msra.mxu0 0.0
    %1764 = vmatprep.subr.mxu0 0.0
    %1765 = vmatpush1.msra.mxu0 0.0
    %1766 = vmatprep.subr.mxu0 0.0
    %1767 = vmatpush1.msra.mxu0 0.0
    %1768 = vmatprep.subr.mxu0 0.0
    %1769 = vmatpush1.msra.mxu0 0.0
    %1770 = vmatprep.subr.mxu0 0.0
    %1771 = vmatpush1.msra.mxu0 0.0
    %1772 = vmatprep.subr.mxu0 0.0
    %1773 = vmatpush1.msra.mxu0 0.0
    %1774 = vmatprep.subr.mxu0 0.0
    %1775 = vmatpush1.msra.mxu0 0.0
    %1776 = vmatprep.subr.mxu0 0.0
    %1777 = vmatpush1.msra.mxu0 0.0
    %1778 = vmatprep.subr.mxu0 0.0
    %1779 = vmatpush1.msra.mxu0 0.0
    %1780 = vmatprep.subr.mxu0 0.0
    %1781 = vmatpush1.msra.mxu0 0.0
    %1782 = vmatprep.subr.mxu0 0.0
    %1783 = vmatpush1.msra.mxu0 0.0
    %1784 = vmatprep.subr.mxu0 0.0
    %1785 = vmatpush1.msra.mxu0 0.0
    %1786 = vmatprep.subr.mxu0 0.0
    %1787 = vmatpush1.msra.mxu0 0.0
    %1788 = vmatprep.subr.mxu0 0.0
    %1789 = vmatpush1.msra.mxu0 0.0
    %1790 = vmatprep.subr.mxu0 0.0
    %1791 = vmatpush1.msra.mxu0 0.0
    %1792 = vmatprep.mubr.f32.mxu0 0.0
    %1793 = vmatmul.mubr.f32.gmra.mrb[0].mxu0 %v1723
    %v1794 = vpop.f32.mrb[0].mxu0
    %v1795 = vadd.f32 %v1720, %v1794
    %v1796 = vpop.f32.mrb[0].mxu0
    %1797 = vmatprep.mubr.f32.mxu0 0.0
    %1798 = vmatmul.mubr.f32.gmra.mrb[0].mxu0 %v1726
    %v1799 = vpop.f32.mrb[0].mxu0
    %v1800 = vadd.f32 %v1720, %v1799
    %v1801 = vpop.f32.mrb[0].mxu0
    %1802 = vdwg.mxu0
    %v1803 = vadd.f32 %v1628, %v1795
    %v1804 = vadd.f32 %v1629, %v1800
    %v1805 = vsel %vm67, %v1803, 0.0
    %1806 = vadd.xlane.f32.xlu0 %v1805
    %v1807 = vpop.xlane.xlu0 %1806
    %v1808 = vsel %vm67, %v1804, 0.0
    %1809 = vadd.xlane.f32.xlu0 %v1808
    %v1810 = vpop.xlane.xlu0 %1809
    %v1811 = vmul.f32 %v1807, %v1593
    %v1812 = vmul.f32 %v1810, %v1593
    %v1813 = vmul.f32 %v1803, %v1803
    %v1814 = vmul.f32 %v1804, %v1804
    %v1815 = vsel %vm67, %v1813, 0.0
    %1816 = vadd.xlane.f32.xlu0 %v1815
    %v1817 = vpop.xlane.xlu0 %1816
    %v1818 = vsel %vm67, %v1814, 0.0
    %1819 = vadd.xlane.f32.xlu0 %v1818
    %v1820 = vpop.xlane.xlu0 %1819
    %v1821 = vmul.f32 %v1817, %v1593
    %v1822 = vmul.f32 %v1820, %v1593
    %v1823 = vmul.f32 %v1811, %v1811
    %v1824 = vmul.f32 %v1812, %v1812
    %v1825 = vsub.f32 %v1821, %v1823
    %v1826 = vsub.f32 %v1822, %v1824
    %v1827 = vsub.f32 %v1803, %v1811
    %v1828 = vsub.f32 %v1804, %v1812
    %v1829 = vadd.f32 %v1825, 1e-05
    %v1830 = vadd.f32 %v1826, 1e-05
    %v1831 = vrsqrt.pop %v1829
    %v1832 = vrsqrt.pop %v1830
    %v1833 = vmul.f32 %v1827, %v1831
    %v1834 = vmul.f32 %v1828, %v1832
    %v1835 = vlaneseq
    %v1836 = vshrl.u32 %v1835, 7
    %v1837 = vsub.s32 6, %v1836
    %v1838 = vrot.slane %v62, %v1837
    %v1839 = vmul.f32 %v1833, %v1838
    %v1840 = vmul.f32 %v1834, %v1838
    %v1841 = vlaneseq
    %v1842 = vshrl.u32 %v1841, 7
    %v1843 = vsub.s32 7, %v1842
    %v1844 = vrot.slane %v62, %v1843
    %v1845 = vadd.f32 %v1839, %v1844
    %v1846 = vadd.f32 %v1840, %v1844
    %1847 = vst.msk [vmem:[#allocation7] sm:$0xff] %vm67, %v1845
    %1848 = vst.msk [vmem:[#allocation7 + $0x8] sm:$0xff] %vm67, %v1846
    // Predicated region
    $region18: #{tpu_custom_call.1} parent=1 // pred_check
      _
    $region19: #{tpu_custom_call.1} parent=1 // pred_check_branch
      %1850 = sbr.rel (0) target = $region21
    $region20: #{tpu_custom_call.1} parent=1 // pred_region
      %s1852 = ssub.s32 256, 256
      %1853 = vsyncadd [#allocation4], %s1852
      %s1854 = sshll.u32 [#allocation7], 4
      %s1855 = int_to_ptr.vmem [resolvable:$true] %s1854
      %1860 = dma.vmem_to_hbm [thread:$0]  %s1855, 256, %s2, [#allocation4], 128, 128, 8
    $region21: #{tpu_custom_call.1} parent=1 // pred_fallthru
      _
    // Predicated region
    $region22: #{tpu_custom_call.1} parent=1 // pred_check
      _
    $region23: #{tpu_custom_call.1} parent=1 // pred_check_branch
      %1862 = sbr.rel (0) target = $region25
    $region24: #{tpu_custom_call.1} parent=1 // pred_region
      %1863 = dma.done [#allocation4], 256
    $region25: #{tpu_custom_call.1} parent=1 // pred_fallthru
      _
    %1864 = vsyncpa [#allocation3], 1
    %1865 = vsyncpa [#allocation6], 1
    %1866 = vsyncpa [#allocation4], 1

</llo_original>
